<compile_context>
chip_gen: v6e
topology: v6e:2x2x1
jax: 0.10.0
libtpu: 0.0.40
codegen_flags: <defaults>
</compile_context>

<pallas_src>
import math
from functools import partial

import jax
import jax.numpy as jnp
from jax.experimental import pallas as pl
from jax.experimental.pallas import tpu as pltpu

LANE = 128


def _leaky_relu(x):
    # nn.LeakyReLU default negative_slope = 0.01
    return jnp.where(x >= 0, x, 0.01 * x)


def _round_up(x, m):
    return ((x + m - 1) // m) * m


def _pad_cols(m, cols):
    return jnp.pad(m, ((0, 0), (0, cols - m.shape[1])))


# -----------------------------------------------------------------------------
# Kernel
# -----------------------------------------------------------------------------
def film_t_agent_kernel(
    obs_ref, h_ref,
    w_obs_ref, w_ref, b_ref,
    tfreq_ref, rep_ref, gsum_ref, qp_ref,
    out_ref,
    *, n_act, hidden, seg,
):
    f32 = jnp.float32
    H = hidden
    wdt = w_ref.dtype  # matmul operand dtype (bf16 fast path or f32)

    def wseg(name):
        off, width = seg[name]
        return w_ref[:, off:off + width]

    def bseg(name):
        off, width = seg[name]
        return b_ref[:, off:off + width]

    def lin(x, name):
        return (jnp.dot(x.astype(wdt), wseg(name), preferred_element_type=f32)
                + bseg(name))

    obs = obs_ref[...]                       # (TM, D+1) obs with timestep appended
    h_in = h_ref[...]                        # (TM, H)
    h_f32 = h_in.astype(f32)
    t = obs[:, -1:].astype(f32)              # (TM, 1) timestep (last column)

    # --- obs encoding + type embedding fused into one (D+1, 2H) matmul ---
    # cols [0,H): obs_encoding Linear; cols [H,2H): one-hot unit-type lookup.
    enc = (jnp.dot(obs, w_obs_ref[...], preferred_element_type=f32)
           + bseg("obs_b"))                  # (TM, 2H)
    x = _leaky_relu(enc[:, :H])
    type_emb = enc[:, H:]

    # --- GRUCell (torch semantics), fused [r|z|n] gate matmuls ---
    gi = lin(x, "ih")                        # (TM, 3H)
    gh = lin(h_in, "hh")                     # (TM, 3H)
    rz = jax.nn.sigmoid(gi[:, :2 * H] + gh[:, :2 * H])   # one 64-lane EUP pass
    r = rz[:, :H]
    z = rz[:, H:]
    n = jnp.tanh(gi[:, 2 * H:] + r * gh[:, 2 * H:])
    hh = (1.0 - z) * n + z * h_f32

    # --- q projection ---
    q = lin(hh, "q")                         # (TM, n_act)

    # --- timestep embedding: single sin pass (cos = sin(x + pi/2) via phase row) ---
    t_freq = jnp.sin(t * tfreq_ref[0:1, :] + tfreq_ref[1:2, :])   # (TM, H)
    t1 = lin(t_freq, "t1")
    t1 = t1 * jax.nn.sigmoid(t1)             # SiLU
    emb = lin(t1, "t2") + type_emb

    # --- FiLM modulation MLP, fused weight+bias head (original layout) ---
    m = _leaky_relu(lin(emb, "m1"))
    m = _leaky_relu(lin(m, "m2"))
    mod = lin(m, "m3")                       # (TM, n_act*(n_act+1))
    mod_w = mod[:, :n_act * n_act]           # W[a, j] flattened as a*n_act + j
    mod_b = mod[:, n_act * n_act:]           # (TM, n_act)

    # q_mod[n, j] = sum_a q[n, a] * W[n, a, j] + b[n, j], all on the MXU:
    #   q_rep = q @ R   (R replicates q[a] across the j positions of row a)
    #   q_mod = (q_rep * mod_w) @ S  (S sums the a-groups per j)
    q_rep = jnp.dot(q.astype(wdt), rep_ref[...], preferred_element_type=f32)
    q_mod = (jnp.dot((q_rep * mod_w).astype(wdt), gsum_ref[...],
                     preferred_element_type=f32) + mod_b)

    # --- merge head: fused (alpha|beta|gamma), each replicated to n_act lanes ---
    mg = lin(emb, "mg")                      # (TM, 3*n_act)
    alpha = mg[:, :n_act]
    beta = mg[:, n_act:2 * n_act]
    gamma = mg[:, 2 * n_act:]

    q_final = q + alpha * ((1.0 + gamma) * q_mod + beta)

    # --- lane-dense packed output: q in lanes [0, n_act), hh in [n_act, n_act+H) ---
    out = (jnp.dot(q_final.astype(wdt), qp_ref[...], preferred_element_type=f32)
           + jnp.dot(hh.astype(wdt), wseg("hp"), preferred_element_type=f32))
    out_ref[...] = out.astype(out_ref.dtype)


# -----------------------------------------------------------------------------
# Parameter packing
# -----------------------------------------------------------------------------
def pack_params(params, cfg, dtype=jnp.bfloat16):
    """Pack per-layer parameters into kernel operands (128-aligned segments)."""
    f32 = jnp.float32
    H = cfg["hidden"]
    n_act = cfg["n_act"]
    n_types = cfg["n_types"]
    ut_start = cfg["ut_start"]
    D1 = jnp.asarray(params["w_obs"]).shape[0]      # input_dim + 1

    assert H % 2 == 0, "hidden dim must be even for the sinusoidal embedding"
    assert n_act + H <= LANE, "packed (q | hh) output must fit in 128 lanes"
    assert jnp.asarray(params["type_table"]).shape == (n_types, H)

    # Fused obs-encoding + type-embedding weight: (D+1, 2H).
    # Requires the unit-type slice of obs to be a strict one-hot (matches
    # torch.argmax + nn.Embedding exactly under that precondition).
    w_obs_ext = jnp.zeros((D1, 2 * H), f32)
    w_obs_ext = w_obs_ext.at[:, :H].set(jnp.asarray(params["w_obs"], f32))
    w_obs_ext = w_obs_ext.at[ut_start:ut_start + n_types, H:].set(
        jnp.asarray(params["type_table"], f32))
    b_obs_ext = jnp.concatenate(
        [jnp.asarray(params["b_obs"], f32), jnp.zeros((H,), f32)])

    # Fused GRU gate weights/biases (torch gate order r, z, n).
    w_ih = jnp.concatenate([params["w_ih_r"], params["w_ih_z"], params["w_ih_n"]], axis=1)
    b_ih = jnp.concatenate([params["b_ih_r"], params["b_ih_z"], params["b_ih_n"]])
    w_hh = jnp.concatenate([params["w_hh_r"], params["w_hh_z"], params["w_hh_n"]], axis=1)
    b_hh = jnp.concatenate([params["b_hh_r"], params["b_hh_z"], params["b_hh_n"]])

    # Fused merge head: alpha/beta/gamma columns each replicated to n_act lanes.
    w_mg = jnp.asarray(params["w_mg"], f32)
    b_mg = jnp.asarray(params["b_mg"], f32)
    w_mg_rep = jnp.concatenate(
        [jnp.repeat(w_mg[:, k:k + 1], n_act, axis=1) for k in range(3)], axis=1)
    b_mg_rep = jnp.concatenate(
        [jnp.repeat(b_mg[k:k + 1], n_act) for k in range(3)])

    # Placement matrices for the packed (TM, 128) output slab.
    h_place = jnp.zeros((H, LANE), f32).at[jnp.arange(H), n_act + jnp.arange(H)].set(1.0)
    q_place = jnp.zeros((n_act, LANE), f32).at[jnp.arange(n_act), jnp.arange(n_act)].set(1.0)

    segments = [
        ("ih", w_ih, b_ih),
        ("hh", w_hh, b_hh),
        ("q",  params["w_q"],  params["b_q"]),
        ("t1", params["w_t1"], params["b_t1"]),
        ("t2", params["w_t2"], params["b_t2"]),
        ("m1", params["w_m1"], params["b_m1"]),
        ("m2", params["w_m2"], params["b_m2"]),
        ("m3", params["w_m3"], params["b_m3"]),   # width n_act*(n_act+1)
        ("mg", w_mg_rep, b_mg_rep),
        ("hp", h_place, jnp.zeros((LANE,), f32)),
    ]

    seg = {}
    w_cols, b_cols = [], []
    off = 0
    for name, w, b in segments:
        w = jnp.asarray(w, f32)
        b = jnp.asarray(b, f32).reshape(1, -1)
        width = w.shape[1]
        padded = _round_up(width, LANE)
        seg[name] = (off, width)
        w_cols.append(_pad_cols(w, padded))
        b_cols.append(_pad_cols(b, padded))
        off += padded
    # Extra bias-only segment for the fused obs/type encoder.
    seg["obs_b"] = (off, 2 * H)
    b_cols.append(_pad_cols(b_obs_ext.reshape(1, -1), _round_up(2 * H, LANE)))

    w_blob = jnp.concatenate(w_cols, axis=1).astype(dtype)   # (H, n_seg*128)
    b_blob = jnp.concatenate(b_cols, axis=1)                 # (1, ...), f32

    # FiLM replication / group-sum constants (0/1 matrices, exact in bf16).
    cols = jnp.arange(n_act * n_act)
    rep = (jnp.arange(n_act)[:, None] == (cols[None, :] // n_act)).astype(dtype)
    gsum = ((cols[:, None] % n_act) == jnp.arange(n_act)[None, :]).astype(dtype)

    # Sinusoidal table: row 0 = frequencies (cos half | sin half),
    # row 1 = phase (+pi/2 on the cos half so a single sin() suffices).
    half = H // 2
    freqs = jnp.exp(-math.log(cfg["max_period"]) * jnp.arange(half, dtype=f32) / half)
    tfreq = jnp.stack(
        [jnp.concatenate([freqs, freqs]),
         jnp.concatenate([jnp.full((half,), math.pi / 2, f32), jnp.zeros((half,), f32)])],
        axis=0)                                               # (2, H), f32

    return dict(
        w_obs=w_obs_ext.astype(dtype), w_blob=w_blob, b_blob=b_blob,
        tfreq=tfreq, film_rep=rep, film_sum=gsum,
        q_place=q_place.astype(dtype), seg=seg,
    )


def _pick_tm(n_rows, requested=None, cap=1024):
    """Row tile size: >=2 grid steps (megacore sharding on v7x) when possible,
    large tiles (<= cap) to amortize per-step overhead on v5e/v6e."""
    if requested is None:
        tm = _round_up(max(8, -(-n_rows // 2)), 8)
        tm = min(tm, cap)
    else:
        tm = requested
    return max(8, _round_up(min(tm, _round_up(n_rows, 8)), 8))


# -----------------------------------------------------------------------------
# Wrapper
# -----------------------------------------------------------------------------
def film_t_agent_forward(obs, timestep, hidden_state, params, cfg, *,
                         tm=None, compute_dtype=jnp.bfloat16):
    """Forward pass. `compute_dtype` controls the MXU operand dtype (bf16 fast
    path; f32 for bit-accurate checking). Accumulation / elementwise math is
    always f32. Precondition: obs[..., ut_start:ut_end] is a strict one-hot."""
    B, A, D = obs.shape
    H = cfg["hidden"]
    n_act = cfg["n_act"]
    N = B * A
    f32 = jnp.float32

    packed = pack_params(params, cfg, dtype=compute_dtype)

    obs_cat = jnp.concatenate([obs, timestep], axis=-1).reshape(N, D + 1).astype(compute_dtype)
    h_in = hidden_state.reshape(N, H).astype(compute_dtype)

    tm_ = _pick_tm(N, tm)
    n_pad = _round_up(N, tm_)
    pad = n_pad - N
    if pad:
        obs_cat = jnp.pad(obs_cat, ((0, pad), (0, 0)))
        h_in = jnp.pad(h_in, ((0, pad), (0, 0)))
    grid = (n_pad // tm_,)

    kernel = partial(film_t_agent_kernel, n_act=n_act, hidden=H, seg=packed["seg"])

    def row_spec(cols):
        return pl.BlockSpec((tm_, cols), lambda i: (i, 0))

    def const_spec(arr):
        return pl.BlockSpec(arr.shape, lambda i: (0, 0))

    out = pl.pallas_call(
        kernel,
        out_shape=jax.ShapeDtypeStruct((n_pad, LANE), f32),
        grid=grid,
        in_specs=[
            row_spec(D + 1),                      # obs_cat (incl. timestep)
            row_spec(H),                          # hidden state
            const_spec(packed["w_obs"]),
            const_spec(packed["w_blob"]),
            const_spec(packed["b_blob"]),
            const_spec(packed["tfreq"]),
            const_spec(packed["film_rep"]),
            const_spec(packed["film_sum"]),
            const_spec(packed["q_place"]),
        ],
        out_specs=row_spec(LANE),
        compiler_params=pltpu.CompilerParams(
            dimension_semantics=("parallel",)),
    )(obs_cat, h_in,
      packed["w_obs"], packed["w_blob"], packed["b_blob"],
      packed["tfreq"], packed["film_rep"], packed["film_sum"], packed["q_place"])

    q = out[:N, :n_act].reshape(B, A, n_act)
    hh = out[:N, n_act:n_act + H].reshape(B, A, H)
    return q, hh


# -----------------------------------------------------------------------------
# Synthetic parameters + pure-JAX reference (mirrors the PyTorch module)
# -----------------------------------------------------------------------------
def init_params(key, input_dim, hidden, n_act, n_types):
    """Deterministic synthetic parameters matching the module's shapes.
    GRU weights are stored per-gate, already transposed to (in, out)."""
    H = hidden
    keys = iter(jax.random.split(key, 40))
    scale = 0.1

    def w(shape):
        return jax.random.normal(next(keys), shape, jnp.float32) * scale

    p = {}
    p["w_obs"], p["b_obs"] = w((input_dim + 1, H)), w((H,))
    for g in ("r", "z", "n"):
        p[f"w_ih_{g}"], p[f"b_ih_{g}"] = w((H, H)), w((H,))
        p[f"w_hh_{g}"], p[f"b_hh_{g}"] = w((H, H)), w((H,))
    p["w_q"], p["b_q"] = w((H, n_act)), w((n_act,))
    p["type_table"] = w((n_types, H))
    p["w_t1"], p["b_t1"] = w((H, H)), w((H,))
    p["w_t2"], p["b_t2"] = w((H, H)), w((H,))
    p["w_m1"], p["b_m1"] = w((H, H)), w((H,))
    p["w_m2"], p["b_m2"] = w((H, H)), w((H,))
    p["w_m3"], p["b_m3"] = w((H, n_act * (n_act + 1))), w((n_act * (n_act + 1),))
    p["w_mg"], p["b_mg"] = w((H, 3)), w((3,))
    return p


def reference_forward(obs, timestep, hidden_state, params, cfg):
    """Pure-JAX reference mirroring the PyTorch forward semantics."""
    B, A, D = obs.shape
    H = cfg["hidden"]
    n_act = cfg["n_act"]
    N = B * A
    obs_cat = jnp.concatenate([obs, timestep], axis=-1).reshape(N, D + 1)
    t = timestep.reshape(N, 1).astype(jnp.float32)
    h_in = hidden_state.reshape(N, H)
    leaky = lambda v: jnp.where(v >= 0, v, 0.01 * v)

    x = leaky(obs_cat @ params["w_obs"] + params["b_obs"])
    r = jax.nn.sigmoid(x @ params["w_ih_r"] + params["b_ih_r"]
                       + h_in @ params["w_hh_r"] + params["b_hh_r"])
    z = jax.nn.sigmoid(x @ params["w_ih_z"] + params["b_ih_z"]
                       + h_in @ params["w_hh_z"] + params["b_hh_z"])
    n = jnp.tanh(x @ params["w_ih_n"] + params["b_ih_n"]
                 + r * (h_in @ params["w_hh_n"] + params["b_hh_n"]))
    hh = (1.0 - z) * n + z * h_in
    q = hh @ params["w_q"] + params["b_q"]

    ut = obs_cat[:, cfg["ut_start"]:cfg["ut_end"]]
    type_emb = params["type_table"][jnp.argmax(ut, axis=-1)]

    half = H // 2
    freqs = jnp.exp(-math.log(cfg["max_period"]) * jnp.arange(half, dtype=jnp.float32) / half)
    args = t * freqs
    t_freq = jnp.concatenate([jnp.cos(args), jnp.sin(args)], axis=-1)
    t1 = t_freq @ params["w_t1"] + params["b_t1"]
    t1 = t1 * jax.nn.sigmoid(t1)
    t_emb = t1 @ params["w_t2"] + params["b_t2"]
    emb = t_emb + type_emb

    m = leaky(emb @ params["w_m1"] + params["b_m1"])
    m = leaky(m @ params["w_m2"] + params["b_m2"])
    mod = (m @ params["w_m3"] + params["b_m3"]).reshape(N, n_act + 1, n_act)
    w_mod, b_mod = mod[:, :n_act, :], mod[:, n_act, :]
    q_mod = jnp.einsum("na,naj->nj", q, w_mod) + b_mod

    mg = emb @ params["w_mg"] + params["b_mg"]
    alpha, beta, gamma = mg[:, 0:1], mg[:, 1:2], mg[:, 2:3]
    q_final = q + alpha * ((1.0 + gamma) * q_mod + beta)
    return q_final.reshape(B, A, n_act), hh.reshape(B, A, H)


if __name__ == "__main__":
    # Small shapes consistent with the module's forward:
    #   obs: (batch, n_agents, input_shape), timestep: (batch, n_agents, 1)
    #   hidden_state: (batch, n_agents, rnn_hidden_dim)
    B, A = 2, 3
    D = 20            # input_shape
    H = 32            # args.rnn_hidden_dim (also frequency_embedding_size)
    N_ACT = 6         # args.n_actions
    UT_START, UT_END = 12, 15   # 'own_unit_type' one-hot slice -> 3 unit types
    N_TYPES = UT_END - UT_START
    cfg = dict(hidden=H, n_act=N_ACT, ut_start=UT_START, ut_end=UT_END,
               n_types=N_TYPES, max_period=200)

    key = jax.random.PRNGKey(0)
    k_obs, k_type, k_h, k_param = jax.random.split(key, 4)

    obs = jax.random.normal(k_obs, (B, A, D), jnp.float32)
    # make the unit-type slice a proper one-hot, like the real env observation
    type_ids = jax.random.randint(k_type, (B, A), 0, N_TYPES)
    obs = obs.at[:, :, UT_START:UT_END].set(
        jax.nn.one_hot(type_ids, N_TYPES, dtype=jnp.float32))
    timestep = jnp.arange(B * A, dtype=jnp.float32).reshape(B, A, 1)
    hidden_state = jax.random.normal(k_h, (B, A, H), jnp.float32) * 0.1

    # Precondition for the fused type-embedding lookup: strict one-hot slice.
    ut = obs[:, :, UT_START:UT_END]
    assert bool(jnp.all((jnp.sum(ut, -1) == 1) & (jnp.max(ut, -1) == 1)))

    params = init_params(k_param, D, H, N_ACT, N_TYPES)
    q_ref, hh_ref = reference_forward(obs, timestep, hidden_state, params, cfg)

    # 1) f32 operand path: tight tolerance verifies segment packing / offsets.
    q32, hh32 = film_t_agent_forward(obs, timestep, hidden_state, params, cfg,
                                     compute_dtype=jnp.float32)
    q32 = jax.block_until_ready(q32)
    hh32 = jax.block_until_ready(hh32)
    assert q32.shape == (B, A, N_ACT) and hh32.shape == (B, A, H)
    assert jnp.allclose(q32, q_ref, atol=1e-4, rtol=1e-4), \
        float(jnp.max(jnp.abs(q32 - q_ref)))
    assert jnp.allclose(hh32, hh_ref, atol=1e-4, rtol=1e-4), \
        float(jnp.max(jnp.abs(hh32 - hh_ref)))

    # 2) bf16 matmul-operand fast path (default; f32 accumulation/elementwise).
    qbf, hhbf = film_t_agent_forward(obs, timestep, hidden_state, params, cfg)
    qbf = jax.block_until_ready(qbf)
    hhbf = jax.block_until_ready(hhbf)
    assert jnp.allclose(qbf, q_ref, atol=3e-2, rtol=3e-2), \
        float(jnp.max(jnp.abs(qbf - q_ref)))
    assert jnp.allclose(hhbf, hh_ref, atol=3e-2, rtol=3e-2), \
        float(jnp.max(jnp.abs(hhbf - hh_ref)))

    print("KERNEL_OK")
</pallas_src>

<mosaic_0001>
module attributes {stable_mosaic.version = 11 : i64} {
  func.func @film_t_agent_kernel(%arg0: i32, %arg1: memref<8x21xf32, #tpu.memory_space<vmem>>, %arg2: memref<8x32xf32, #tpu.memory_space<vmem>>, %arg3: memref<21x64xf32, #tpu.memory_space<vmem>>, %arg4: memref<32x1280xf32, #tpu.memory_space<vmem>>, %arg5: memref<1x1408xf32, #tpu.memory_space<vmem>>, %arg6: memref<2x32xf32, #tpu.memory_space<vmem>>, %arg7: memref<6x36xf32, #tpu.memory_space<vmem>>, %arg8: memref<36x6xf32, #tpu.memory_space<vmem>>, %arg9: memref<6x128xf32, #tpu.memory_space<vmem>>, %arg10: memref<8x128xf32, #tpu.memory_space<vmem>>) attributes {dimension_semantics = [#tpu.dimension_semantics<parallel>], iteration_bounds = array<i64: 1>, scalar_prefetch = 0 : i64, scratch_operands = 0 : i64, tpu.core_type = #tpu.core_type<tc>, window_params = [{transform_indices = @transform_0, window_bounds = array<i64: 8, 21>}, {transform_indices = @transform_1, window_bounds = array<i64: 8, 32>}, {pipeline_mode = #tpu.pipeline_mode<synchronous>, transform_indices = @transform_2, window_bounds = array<i64: 21, 64>}, {pipeline_mode = #tpu.pipeline_mode<synchronous>, transform_indices = @transform_3, window_bounds = array<i64: 32, 1280>}, {pipeline_mode = #tpu.pipeline_mode<synchronous>, transform_indices = @transform_4, window_bounds = array<i64: 1, 1408>}, {pipeline_mode = #tpu.pipeline_mode<synchronous>, transform_indices = @transform_5, window_bounds = array<i64: 2, 32>}, {pipeline_mode = #tpu.pipeline_mode<synchronous>, transform_indices = @transform_6, window_bounds = array<i64: 6, 36>}, {pipeline_mode = #tpu.pipeline_mode<synchronous>, transform_indices = @transform_7, window_bounds = array<i64: 36, 6>}, {pipeline_mode = #tpu.pipeline_mode<synchronous>, transform_indices = @transform_8, window_bounds = array<i64: 6, 128>}, {transform_indices = @transform_9, window_bounds = array<i64: 8, 128>}]} {
    %c0 = arith.constant 0 : index
    %c0_0 = arith.constant 0 : index
    %0 = vector.load %arg1[%c0, %c0_0] : memref<8x21xf32, #tpu.memory_space<vmem>>, vector<8x21xf32>
    %c0_1 = arith.constant 0 : index
    %c0_2 = arith.constant 0 : index
    %1 = vector.load %arg2[%c0_1, %c0_2] : memref<8x32xf32, #tpu.memory_space<vmem>>, vector<8x32xf32>
    %2 = vector.extract_strided_slice %0 {offsets = [0, 20], sizes = [8, 1], strides = [1, 1]} : vector<8x21xf32> to vector<8x1xf32>
    %c0_3 = arith.constant 0 : index
    %c0_4 = arith.constant 0 : index
    %3 = vector.load %arg3[%c0_3, %c0_4] : memref<21x64xf32, #tpu.memory_space<vmem>>, vector<21x64xf32>
    %cst = arith.constant dense<0.000000e+00> : vector<8x64xf32>
    %4 = tpu.matmul %0, %3, %cst {dimension_numbers = #tpu.dot_dimension_numbers<[1], [0], [0], [1], [0, 0, 1, 1], [], []>} : vector<8x21xf32>, vector<21x64xf32>, vector<8x64xf32> -> vector<8x64xf32>
    %c0_5 = arith.constant 0 : index
    %c1280 = arith.constant 1280 : index
    %5 = vector.load %arg5[%c0_5, %c1280] : memref<1x1408xf32, #tpu.memory_space<vmem>>, vector<1x64xf32>
    %6 = vector.broadcast %5 : vector<1x64xf32> to vector<8x64xf32>
    %7 = arith.addf %4, %6 : vector<8x64xf32>
    %8 = vector.extract_strided_slice %7 {offsets = [0, 0], sizes = [8, 32], strides = [1, 1]} : vector<8x64xf32> to vector<8x32xf32>
    %cst_6 = arith.constant 0.000000e+00 : f32
    %9 = vector.broadcast %cst_6 : f32 to vector<8x32xf32>
    %10 = arith.cmpf oge, %8, %9 : vector<8x32xf32>
    %cst_7 = arith.constant 0.00999999977 : f32
    %11 = vector.broadcast %cst_7 : f32 to vector<8x32xf32>
    %12 = arith.mulf %11, %8 : vector<8x32xf32>
    %13 = arith.select %10, %8, %12 : vector<8x32xi1>, vector<8x32xf32>
    %14 = vector.extract_strided_slice %7 {offsets = [0, 32], sizes = [8, 32], strides = [1, 1]} : vector<8x64xf32> to vector<8x32xf32>
    %c0_8 = arith.constant 0 : index
    %c0_9 = arith.constant 0 : index
    %15 = vector.load %arg4[%c0_8, %c0_9] : memref<32x1280xf32, #tpu.memory_space<vmem>>, vector<32x96xf32>
    %cst_10 = arith.constant dense<0.000000e+00> : vector<8x96xf32>
    %16 = tpu.matmul %13, %15, %cst_10 {dimension_numbers = #tpu.dot_dimension_numbers<[1], [0], [0], [1], [0, 0, 1, 1], [], []>} : vector<8x32xf32>, vector<32x96xf32>, vector<8x96xf32> -> vector<8x96xf32>
    %c0_11 = arith.constant 0 : index
    %c0_12 = arith.constant 0 : index
    %17 = vector.load %arg5[%c0_11, %c0_12] : memref<1x1408xf32, #tpu.memory_space<vmem>>, vector<1x96xf32>
    %18 = vector.broadcast %17 : vector<1x96xf32> to vector<8x96xf32>
    %19 = arith.addf %16, %18 : vector<8x96xf32>
    %c0_13 = arith.constant 0 : index
    %c128 = arith.constant 128 : index
    %20 = vector.load %arg4[%c0_13, %c128] : memref<32x1280xf32, #tpu.memory_space<vmem>>, vector<32x96xf32>
    %cst_14 = arith.constant dense<0.000000e+00> : vector<8x96xf32>
    %21 = tpu.matmul %1, %20, %cst_14 {dimension_numbers = #tpu.dot_dimension_numbers<[1], [0], [0], [1], [0, 0, 1, 1], [], []>} : vector<8x32xf32>, vector<32x96xf32>, vector<8x96xf32> -> vector<8x96xf32>
    %c0_15 = arith.constant 0 : index
    %c128_16 = arith.constant 128 : index
    %22 = vector.load %arg5[%c0_15, %c128_16] : memref<1x1408xf32, #tpu.memory_space<vmem>>, vector<1x96xf32>
    %23 = vector.broadcast %22 : vector<1x96xf32> to vector<8x96xf32>
    %24 = arith.addf %21, %23 : vector<8x96xf32>
    %25 = vector.extract_strided_slice %19 {offsets = [0, 0], sizes = [8, 64], strides = [1, 1]} : vector<8x96xf32> to vector<8x64xf32>
    %26 = vector.extract_strided_slice %24 {offsets = [0, 0], sizes = [8, 64], strides = [1, 1]} : vector<8x96xf32> to vector<8x64xf32>
    %27 = arith.addf %25, %26 : vector<8x64xf32>
    %28 = arith.negf %27 : vector<8x64xf32>
    %29 = math.exp %28 : vector<8x64xf32>
    %cst_17 = arith.constant 1.000000e+00 : f32
    %30 = vector.broadcast %cst_17 : f32 to vector<8x64xf32>
    %31 = arith.addf %30, %29 : vector<8x64xf32>
    %32 = arith.divf %30, %31 : vector<8x64xf32>
    %33 = vector.extract_strided_slice %32 {offsets = [0, 0], sizes = [8, 32], strides = [1, 1]} : vector<8x64xf32> to vector<8x32xf32>
    %34 = vector.extract_strided_slice %32 {offsets = [0, 32], sizes = [8, 32], strides = [1, 1]} : vector<8x64xf32> to vector<8x32xf32>
    %35 = vector.extract_strided_slice %19 {offsets = [0, 64], sizes = [8, 32], strides = [1, 1]} : vector<8x96xf32> to vector<8x32xf32>
    %36 = vector.extract_strided_slice %24 {offsets = [0, 64], sizes = [8, 32], strides = [1, 1]} : vector<8x96xf32> to vector<8x32xf32>
    %37 = arith.mulf %33, %36 : vector<8x32xf32>
    %38 = arith.addf %35, %37 : vector<8x32xf32>
    %39 = math.tanh %38 : vector<8x32xf32>
    %cst_18 = arith.constant 1.000000e+00 : f32
    %40 = vector.broadcast %cst_18 : f32 to vector<8x32xf32>
    %41 = arith.subf %40, %34 : vector<8x32xf32>
    %42 = arith.mulf %41, %39 : vector<8x32xf32>
    %43 = arith.mulf %34, %1 : vector<8x32xf32>
    %44 = arith.addf %42, %43 : vector<8x32xf32>
    %c0_19 = arith.constant 0 : index
    %c256 = arith.constant 256 : index
    %45 = vector.load %arg4[%c0_19, %c256] : memref<32x1280xf32, #tpu.memory_space<vmem>>, vector<32x6xf32>
    %cst_20 = arith.constant dense<0.000000e+00> : vector<8x6xf32>
    %46 = tpu.matmul %44, %45, %cst_20 {dimension_numbers = #tpu.dot_dimension_numbers<[1], [0], [0], [1], [0, 0, 1, 1], [], []>} : vector<8x32xf32>, vector<32x6xf32>, vector<8x6xf32> -> vector<8x6xf32>
    %c0_21 = arith.constant 0 : index
    %c256_22 = arith.constant 256 : index
    %47 = vector.load %arg5[%c0_21, %c256_22] : memref<1x1408xf32, #tpu.memory_space<vmem>>, vector<1x6xf32>
    %48 = vector.broadcast %47 : vector<1x6xf32> to vector<8x6xf32>
    %49 = arith.addf %46, %48 : vector<8x6xf32>
    %c0_23 = arith.constant 0 : index
    %c0_24 = arith.constant 0 : index
    %50 = vector.load %arg6[%c0_23, %c0_24] : memref<2x32xf32, #tpu.memory_space<vmem>>, vector<1x32xf32>
    %51 = vector.broadcast %2 : vector<8x1xf32> to vector<8x32xf32>
    %52 = vector.broadcast %50 : vector<1x32xf32> to vector<8x32xf32>
    %53 = arith.mulf %51, %52 : vector<8x32xf32>
    %c1 = arith.constant 1 : index
    %c0_25 = arith.constant 0 : index
    %54 = vector.load %arg6[%c1, %c0_25] : memref<2x32xf32, #tpu.memory_space<vmem>>, vector<1x32xf32>
    %55 = vector.broadcast %54 : vector<1x32xf32> to vector<8x32xf32>
    %56 = arith.addf %53, %55 : vector<8x32xf32>
    %57 = math.sin %56 : vector<8x32xf32>
    %c0_26 = arith.constant 0 : index
    %c384 = arith.constant 384 : index
    %58 = vector.load %arg4[%c0_26, %c384] : memref<32x1280xf32, #tpu.memory_space<vmem>>, vector<32x32xf32>
    %cst_27 = arith.constant dense<0.000000e+00> : vector<8x32xf32>
    %59 = tpu.matmul %57, %58, %cst_27 {dimension_numbers = #tpu.dot_dimension_numbers<[1], [0], [0], [1], [0, 0, 1, 1], [], []>} : vector<8x32xf32>, vector<32x32xf32>, vector<8x32xf32> -> vector<8x32xf32>
    %c0_28 = arith.constant 0 : index
    %c384_29 = arith.constant 384 : index
    %60 = vector.load %arg5[%c0_28, %c384_29] : memref<1x1408xf32, #tpu.memory_space<vmem>>, vector<1x32xf32>
    %61 = vector.broadcast %60 : vector<1x32xf32> to vector<8x32xf32>
    %62 = arith.addf %59, %61 : vector<8x32xf32>
    %63 = arith.negf %62 : vector<8x32xf32>
    %64 = math.exp %63 : vector<8x32xf32>
    %cst_30 = arith.constant 1.000000e+00 : f32
    %65 = vector.broadcast %cst_30 : f32 to vector<8x32xf32>
    %66 = arith.addf %65, %64 : vector<8x32xf32>
    %67 = arith.divf %65, %66 : vector<8x32xf32>
    %68 = arith.mulf %62, %67 : vector<8x32xf32>
    %c0_31 = arith.constant 0 : index
    %c512 = arith.constant 512 : index
    %69 = vector.load %arg4[%c0_31, %c512] : memref<32x1280xf32, #tpu.memory_space<vmem>>, vector<32x32xf32>
    %cst_32 = arith.constant dense<0.000000e+00> : vector<8x32xf32>
    %70 = tpu.matmul %68, %69, %cst_32 {dimension_numbers = #tpu.dot_dimension_numbers<[1], [0], [0], [1], [0, 0, 1, 1], [], []>} : vector<8x32xf32>, vector<32x32xf32>, vector<8x32xf32> -> vector<8x32xf32>
    %c0_33 = arith.constant 0 : index
    %c512_34 = arith.constant 512 : index
    %71 = vector.load %arg5[%c0_33, %c512_34] : memref<1x1408xf32, #tpu.memory_space<vmem>>, vector<1x32xf32>
    %72 = vector.broadcast %71 : vector<1x32xf32> to vector<8x32xf32>
    %73 = arith.addf %70, %72 : vector<8x32xf32>
    %74 = arith.addf %73, %14 : vector<8x32xf32>
    %c0_35 = arith.constant 0 : index
    %c640 = arith.constant 640 : index
    %75 = vector.load %arg4[%c0_35, %c640] : memref<32x1280xf32, #tpu.memory_space<vmem>>, vector<32x32xf32>
    %cst_36 = arith.constant dense<0.000000e+00> : vector<8x32xf32>
    %76 = tpu.matmul %74, %75, %cst_36 {dimension_numbers = #tpu.dot_dimension_numbers<[1], [0], [0], [1], [0, 0, 1, 1], [], []>} : vector<8x32xf32>, vector<32x32xf32>, vector<8x32xf32> -> vector<8x32xf32>
    %c0_37 = arith.constant 0 : index
    %c640_38 = arith.constant 640 : index
    %77 = vector.load %arg5[%c0_37, %c640_38] : memref<1x1408xf32, #tpu.memory_space<vmem>>, vector<1x32xf32>
    %78 = vector.broadcast %77 : vector<1x32xf32> to vector<8x32xf32>
    %79 = arith.addf %76, %78 : vector<8x32xf32>
    %cst_39 = arith.constant 0.000000e+00 : f32
    %80 = vector.broadcast %cst_39 : f32 to vector<8x32xf32>
    %81 = arith.cmpf oge, %79, %80 : vector<8x32xf32>
    %cst_40 = arith.constant 0.00999999977 : f32
    %82 = vector.broadcast %cst_40 : f32 to vector<8x32xf32>
    %83 = arith.mulf %82, %79 : vector<8x32xf32>
    %84 = arith.select %81, %79, %83 : vector<8x32xi1>, vector<8x32xf32>
    %c0_41 = arith.constant 0 : index
    %c768 = arith.constant 768 : index
    %85 = vector.load %arg4[%c0_41, %c768] : memref<32x1280xf32, #tpu.memory_space<vmem>>, vector<32x32xf32>
    %cst_42 = arith.constant dense<0.000000e+00> : vector<8x32xf32>
    %86 = tpu.matmul %84, %85, %cst_42 {dimension_numbers = #tpu.dot_dimension_numbers<[1], [0], [0], [1], [0, 0, 1, 1], [], []>} : vector<8x32xf32>, vector<32x32xf32>, vector<8x32xf32> -> vector<8x32xf32>
    %c0_43 = arith.constant 0 : index
    %c768_44 = arith.constant 768 : index
    %87 = vector.load %arg5[%c0_43, %c768_44] : memref<1x1408xf32, #tpu.memory_space<vmem>>, vector<1x32xf32>
    %88 = vector.broadcast %87 : vector<1x32xf32> to vector<8x32xf32>
    %89 = arith.addf %86, %88 : vector<8x32xf32>
    %cst_45 = arith.constant 0.000000e+00 : f32
    %90 = vector.broadcast %cst_45 : f32 to vector<8x32xf32>
    %91 = arith.cmpf oge, %89, %90 : vector<8x32xf32>
    %cst_46 = arith.constant 0.00999999977 : f32
    %92 = vector.broadcast %cst_46 : f32 to vector<8x32xf32>
    %93 = arith.mulf %92, %89 : vector<8x32xf32>
    %94 = arith.select %91, %89, %93 : vector<8x32xi1>, vector<8x32xf32>
    %c0_47 = arith.constant 0 : index
    %c896 = arith.constant 896 : index
    %95 = vector.load %arg4[%c0_47, %c896] : memref<32x1280xf32, #tpu.memory_space<vmem>>, vector<32x42xf32>
    %cst_48 = arith.constant dense<0.000000e+00> : vector<8x42xf32>
    %96 = tpu.matmul %94, %95, %cst_48 {dimension_numbers = #tpu.dot_dimension_numbers<[1], [0], [0], [1], [0, 0, 1, 1], [], []>} : vector<8x32xf32>, vector<32x42xf32>, vector<8x42xf32> -> vector<8x42xf32>
    %c0_49 = arith.constant 0 : index
    %c896_50 = arith.constant 896 : index
    %97 = vector.load %arg5[%c0_49, %c896_50] : memref<1x1408xf32, #tpu.memory_space<vmem>>, vector<1x42xf32>
    %98 = vector.broadcast %97 : vector<1x42xf32> to vector<8x42xf32>
    %99 = arith.addf %96, %98 : vector<8x42xf32>
    %100 = vector.extract_strided_slice %99 {offsets = [0, 0], sizes = [8, 36], strides = [1, 1]} : vector<8x42xf32> to vector<8x36xf32>
    %101 = vector.extract_strided_slice %99 {offsets = [0, 36], sizes = [8, 6], strides = [1, 1]} : vector<8x42xf32> to vector<8x6xf32>
    %c0_51 = arith.constant 0 : index
    %c0_52 = arith.constant 0 : index
    %102 = vector.load %arg7[%c0_51, %c0_52] : memref<6x36xf32, #tpu.memory_space<vmem>>, vector<6x36xf32>
    %cst_53 = arith.constant dense<0.000000e+00> : vector<8x36xf32>
    %103 = tpu.matmul %49, %102, %cst_53 {dimension_numbers = #tpu.dot_dimension_numbers<[1], [0], [0], [1], [0, 0, 1, 1], [], []>} : vector<8x6xf32>, vector<6x36xf32>, vector<8x36xf32> -> vector<8x36xf32>
    %104 = arith.mulf %103, %100 : vector<8x36xf32>
    %c0_54 = arith.constant 0 : index
    %c0_55 = arith.constant 0 : index
    %105 = vector.load %arg8[%c0_54, %c0_55] : memref<36x6xf32, #tpu.memory_space<vmem>>, vector<36x6xf32>
    %cst_56 = arith.constant dense<0.000000e+00> : vector<8x6xf32>
    %106 = tpu.matmul %104, %105, %cst_56 {dimension_numbers = #tpu.dot_dimension_numbers<[1], [0], [0], [1], [0, 0, 1, 1], [], []>} : vector<8x36xf32>, vector<36x6xf32>, vector<8x6xf32> -> vector<8x6xf32>
    %107 = arith.addf %106, %101 : vector<8x6xf32>
    %c0_57 = arith.constant 0 : index
    %c1024 = arith.constant 1024 : index
    %108 = vector.load %arg4[%c0_57, %c1024] : memref<32x1280xf32, #tpu.memory_space<vmem>>, vector<32x18xf32>
    %cst_58 = arith.constant dense<0.000000e+00> : vector<8x18xf32>
    %109 = tpu.matmul %74, %108, %cst_58 {dimension_numbers = #tpu.dot_dimension_numbers<[1], [0], [0], [1], [0, 0, 1, 1], [], []>} : vector<8x32xf32>, vector<32x18xf32>, vector<8x18xf32> -> vector<8x18xf32>
    %c0_59 = arith.constant 0 : index
    %c1024_60 = arith.constant 1024 : index
    %110 = vector.load %arg5[%c0_59, %c1024_60] : memref<1x1408xf32, #tpu.memory_space<vmem>>, vector<1x18xf32>
    %111 = vector.broadcast %110 : vector<1x18xf32> to vector<8x18xf32>
    %112 = arith.addf %109, %111 : vector<8x18xf32>
    %113 = vector.extract_strided_slice %112 {offsets = [0, 0], sizes = [8, 6], strides = [1, 1]} : vector<8x18xf32> to vector<8x6xf32>
    %114 = vector.extract_strided_slice %112 {offsets = [0, 6], sizes = [8, 6], strides = [1, 1]} : vector<8x18xf32> to vector<8x6xf32>
    %115 = vector.extract_strided_slice %112 {offsets = [0, 12], sizes = [8, 6], strides = [1, 1]} : vector<8x18xf32> to vector<8x6xf32>
    %cst_61 = arith.constant 1.000000e+00 : f32
    %116 = vector.broadcast %cst_61 : f32 to vector<8x6xf32>
    %117 = arith.addf %116, %115 : vector<8x6xf32>
    %118 = arith.mulf %117, %107 : vector<8x6xf32>
    %119 = arith.addf %118, %114 : vector<8x6xf32>
    %120 = arith.mulf %113, %119 : vector<8x6xf32>
    %121 = arith.addf %49, %120 : vector<8x6xf32>
    %c0_62 = arith.constant 0 : index
    %c0_63 = arith.constant 0 : index
    %122 = vector.load %arg9[%c0_62, %c0_63] : memref<6x128xf32, #tpu.memory_space<vmem>>, vector<6x128xf32>
    %cst_64 = arith.constant dense<0.000000e+00> : vector<8x128xf32>
    %123 = tpu.matmul %121, %122, %cst_64 {dimension_numbers = #tpu.dot_dimension_numbers<[1], [0], [0], [1], [0, 0, 1, 1], [], []>} : vector<8x6xf32>, vector<6x128xf32>, vector<8x128xf32> -> vector<8x128xf32>
    %c0_65 = arith.constant 0 : index
    %c1152 = arith.constant 1152 : index
    %124 = vector.load %arg4[%c0_65, %c1152] : memref<32x1280xf32, #tpu.memory_space<vmem>>, vector<32x128xf32>
    %cst_66 = arith.constant dense<0.000000e+00> : vector<8x128xf32>
    %125 = tpu.matmul %44, %124, %cst_66 {dimension_numbers = #tpu.dot_dimension_numbers<[1], [0], [0], [1], [0, 0, 1, 1], [], []>} : vector<8x32xf32>, vector<32x128xf32>, vector<8x128xf32> -> vector<8x128xf32>
    %126 = arith.addf %123, %125 : vector<8x128xf32>
    %c0_67 = arith.constant 0 : index
    %c0_68 = arith.constant 0 : index
    %127 = vector.load %arg10[%c0_67, %c0_68] : memref<8x128xf32, #tpu.memory_space<vmem>>, vector<8x128xf32>
    tpu.vector_store %arg10[%c0_67, %c0_68], %126 {strides = array<i32>} : memref<8x128xf32, #tpu.memory_space<vmem>>, vector<8x128xf32>,
    return
  }
  func.func @transform_0(%arg0: i32) -> (i32, i32) {
    %c0_i32 = arith.constant 0 : i32
    %c0_i32_0 = arith.constant 0 : i32
    return %arg0, %c0_i32 : i32, i32
  }
  func.func @transform_1(%arg0: i32) -> (i32, i32) {
    %c0_i32 = arith.constant 0 : i32
    %c0_i32_0 = arith.constant 0 : i32
    return %arg0, %c0_i32 : i32, i32
  }
  func.func @transform_2(%arg0: i32) -> (i32, i32) {
    %c0_i32 = arith.constant 0 : i32
    %c0_i32_0 = arith.constant 0 : i32
    %c0_i32_1 = arith.constant 0 : i32
    return %c0_i32, %c0_i32_0 : i32, i32
  }
  func.func @transform_3(%arg0: i32) -> (i32, i32) {
    %c0_i32 = arith.constant 0 : i32
    %c0_i32_0 = arith.constant 0 : i32
    %c0_i32_1 = arith.constant 0 : i32
    return %c0_i32, %c0_i32_0 : i32, i32
  }
  func.func @transform_4(%arg0: i32) -> (i32, i32) {
    %c0_i32 = arith.constant 0 : i32
    %c0_i32_0 = arith.constant 0 : i32
    %c0_i32_1 = arith.constant 0 : i32
    return %c0_i32, %c0_i32_0 : i32, i32
  }
  func.func @transform_5(%arg0: i32) -> (i32, i32) {
    %c0_i32 = arith.constant 0 : i32
    %c0_i32_0 = arith.constant 0 : i32
    %c0_i32_1 = arith.constant 0 : i32
    return %c0_i32, %c0_i32_0 : i32, i32
  }
  func.func @transform_6(%arg0: i32) -> (i32, i32) {
    %c0_i32 = arith.constant 0 : i32
    %c0_i32_0 = arith.constant 0 : i32
    %c0_i32_1 = arith.constant 0 : i32
    return %c0_i32, %c0_i32_0 : i32, i32
  }
  func.func @transform_7(%arg0: i32) -> (i32, i32) {
    %c0_i32 = arith.constant 0 : i32
    %c0_i32_0 = arith.constant 0 : i32
    %c0_i32_1 = arith.constant 0 : i32
    return %c0_i32, %c0_i32_0 : i32, i32
  }
  func.func @transform_8(%arg0: i32) -> (i32, i32) {
    %c0_i32 = arith.constant 0 : i32
    %c0_i32_0 = arith.constant 0 : i32
    %c0_i32_1 = arith.constant 0 : i32
    return %c0_i32, %c0_i32_0 : i32, i32
  }
  func.func @transform_9(%arg0: i32) -> (i32, i32) {
    %c0_i32 = arith.constant 0 : i32
    %c0_i32_0 = arith.constant 0 : i32
    return %arg0, %c0_i32 : i32, i32
  }
}

</mosaic_0001>

<llo_original>
// kernel: tpu_custom_call.1
$region0: #{tpu_custom_call.1}
  #allocation0 [shape = 'u32[]', space=smem, size = 0x4, offset = 0x4, fixed_abs, tag = 'smem constant byte address 0x4 - core index']
  #allocation1 [shape = 'u32[144,128]{1,0:T(1,128)}', space=vmem, size = 0x12000, scoped, tag = 'internal scratch']
  %s0 = inlined_call_operand.vmem [shape: f32[8,21], index: 0, kind: input, shape index: {}]
  %s1 = inlined_call_operand.hbm [shape: f32[8,32], index: 1, kind: input, shape index: {}]
  %s2 = inlined_call_operand.vmem [shape: f32[21,64], index: 2, kind: input, shape index: {}]
  %s3 = inlined_call_operand.hbm [shape: f32[32,1280], index: 3, kind: input, shape index: {}]
  %s4 = inlined_call_operand.vmem [shape: f32[1,1408], index: 4, kind: input, shape index: {}]
  %s5 = inlined_call_operand.hbm [shape: f32[2,32], index: 5, kind: input, shape index: {}]
  %s6 = inlined_call_operand.vmem [shape: f32[6,36], index: 6, kind: input, shape index: {}]
  %s7 = inlined_call_operand.vmem [shape: f32[36,6], index: 7, kind: input, shape index: {}]
  %s8 = inlined_call_operand.hbm [shape: f32[6,128], index: 8, kind: input, shape index: {}]
  %s9 = inlined_call_operand.hbm [shape: f32[8,128], index: 9, kind: output, shape index: {}]
  %s10 = sld [smem:[#allocation0]]
  $region62: #{tpu_custom_call.1} parent=0
    _
  %s12 = ssub.s32 1, %s10
  %s13 = scalar_select 0, %s12, %s10
  $region1: #{tpu_custom_call.1} parent=0
    #allocation2 [shape = 'u8[4096]{0}', space=vmem, size = 0x1000, scoped, tag = 'input window, operand 1, single buffered']
    #allocation3 [shape = 's32[1]{0}', space=sflag, size = 0x4, scoped, tag = 'scoped memory for tpu_custom_call.1']
    #allocation4 [shape = 's32[1]{0}', space=sflag, size = 0x4, scoped, tag = 'scoped memory for tpu_custom_call.1']
    #allocation5 [shape = 'u8[163840]{0}', space=vmem, size = 0x28000, scoped, tag = 'input window, operand 3, single buffered']
    #allocation6 [shape = 's32[1]{0}', space=sflag, size = 0x4, scoped, tag = 'scoped memory for tpu_custom_call.1']
    #allocation7 [shape = 'u8[1024]{0}', space=vmem, size = 0x400, scoped, tag = 'input window, operand 5, single buffered']
    #allocation8 [shape = 'u8[4096]{0}', space=vmem, size = 0x1000, scoped, tag = 'input window, operand 8, single buffered']
    #allocation9 [shape = 's32[1]{0}', space=sflag, size = 0x4, scoped, tag = 'scoped memory for tpu_custom_call.1']
    #allocation10 [shape = 'u8[4096]{0}', space=vmem, size = 0x1000, scoped, tag = 'output window, operand 0, single buffered']
    %14 = vsyncpa [#allocation3], 0
    %15 = vsyncpa [#allocation6], 0
    %16 = vsyncpa [#allocation9], 0
    %17 = vsyncpa [#allocation4], 0
    // Predicated region
    $region2: #{tpu_custom_call.1} parent=1 // pred_check
      _
    $region3: #{tpu_custom_call.1} parent=1 // pred_check_branch
      %19 = sbr.rel (0) target = $region5
    $region4: #{tpu_custom_call.1} parent=1 // pred_region
      _
    $region5: #{tpu_custom_call.1} parent=1 // pred_fallthru
      _
    // Predicated region
    $region6: #{tpu_custom_call.1} parent=1 // pred_check
      _
    $region7: #{tpu_custom_call.1} parent=1 // pred_check_branch
      %21 = sbr.rel (0) target = $region9
    $region8: #{tpu_custom_call.1} parent=1 // pred_region
      %s23 = ssub.s32 128, 128
      %24 = vsyncadd [#allocation3], %s23
      %s26 = sshll.u32 [#allocation2], 4
      %s27 = int_to_ptr.vmem [resolvable:$true] %s26
      %29 = dma.hbm_to_vmem [thread:$0]  %s1, 128, %s27, [#allocation3]
    $region9: #{tpu_custom_call.1} parent=1 // pred_fallthru
      _
    // Predicated region
    $region10: #{tpu_custom_call.1} parent=1 // pred_check
      _
    $region11: #{tpu_custom_call.1} parent=1 // pred_check_branch
      %31 = sbr.rel (0) target = $region13
    $region12: #{tpu_custom_call.1} parent=1 // pred_region
      _
    $region13: #{tpu_custom_call.1} parent=1 // pred_fallthru
      _
    // Predicated region
    $region14: #{tpu_custom_call.1} parent=1 // pred_check
      _
    $region15: #{tpu_custom_call.1} parent=1 // pred_check_branch
      %33 = sbr.rel (0) target = $region17
    $region16: #{tpu_custom_call.1} parent=1 // pred_region
      %s35 = ssub.s32 5120, 5120
      %36 = vsyncadd [#allocation6], %s35
      %s37 = sshll.u32 [#allocation5], 4
      %s38 = int_to_ptr.vmem [resolvable:$true] %s37
      %43 = dma.hbm_to_vmem [thread:$0]  %s3, 5120, %s38, [#allocation6], 1280, 1280, 80
    $region17: #{tpu_custom_call.1} parent=1 // pred_fallthru
      _
    // Predicated region
    $region18: #{tpu_custom_call.1} parent=1 // pred_check
      _
    $region19: #{tpu_custom_call.1} parent=1 // pred_check_branch
      %45 = sbr.rel (0) target = $region21
    $region20: #{tpu_custom_call.1} parent=1 // pred_region
      _
    $region21: #{tpu_custom_call.1} parent=1 // pred_fallthru
      _
    // Predicated region
    $region22: #{tpu_custom_call.1} parent=1 // pred_check
      _
    $region23: #{tpu_custom_call.1} parent=1 // pred_check_branch
      %47 = sbr.rel (0) target = $region25
    $region24: #{tpu_custom_call.1} parent=1 // pred_region
      %s49 = ssub.s32 32, 32
      %50 = vsyncadd [#allocation6], %s49
      %s52 = sshll.u32 [#allocation7], 4
      %s53 = int_to_ptr.vmem [resolvable:$true] %s52
      %55 = dma.hbm_to_vmem [thread:$0]  %s5, 32, %s53, [#allocation6]
    $region25: #{tpu_custom_call.1} parent=1 // pred_fallthru
      _
    // Predicated region
    $region26: #{tpu_custom_call.1} parent=1 // pred_check
      _
    $region27: #{tpu_custom_call.1} parent=1 // pred_check_branch
      %57 = sbr.rel (0) target = $region29
    $region28: #{tpu_custom_call.1} parent=1 // pred_region
      _
    $region29: #{tpu_custom_call.1} parent=1 // pred_fallthru
      _
    // Predicated region
    $region30: #{tpu_custom_call.1} parent=1 // pred_check
      _
    $region31: #{tpu_custom_call.1} parent=1 // pred_check_branch
      %59 = sbr.rel (0) target = $region33
    $region32: #{tpu_custom_call.1} parent=1 // pred_region
      _
    $region33: #{tpu_custom_call.1} parent=1 // pred_fallthru
      _
    // Predicated region
    $region34: #{tpu_custom_call.1} parent=1 // pred_check
      _
    $region35: #{tpu_custom_call.1} parent=1 // pred_check_branch
      %61 = sbr.rel (0) target = $region37
    $region36: #{tpu_custom_call.1} parent=1 // pred_region
      %s63 = ssub.s32 128, 128
      %64 = vsyncadd [#allocation9], %s63
      %s66 = sshll.u32 [#allocation8], 4
      %s67 = int_to_ptr.vmem [resolvable:$true] %s66
      %69 = dma.hbm_to_vmem [thread:$0]  %s8, 128, %s67, [#allocation9]
    $region37: #{tpu_custom_call.1} parent=1 // pred_fallthru
      _
    // Predicated region
    $region38: #{tpu_custom_call.1} parent=1 // pred_check
      _
    $region39: #{tpu_custom_call.1} parent=1 // pred_check_branch
      %71 = sbr.rel (0) target = $region41
    $region40: #{tpu_custom_call.1} parent=1 // pred_region
      %72 = dma.done [#allocation3], 128
    $region41: #{tpu_custom_call.1} parent=1 // pred_fallthru
      _
    // Predicated region
    $region42: #{tpu_custom_call.1} parent=1 // pred_check
      _
    $region43: #{tpu_custom_call.1} parent=1 // pred_check_branch
      %74 = sbr.rel (0) target = $region45
    $region44: #{tpu_custom_call.1} parent=1 // pred_region
      %75 = dma.done [#allocation6], 5120
    $region45: #{tpu_custom_call.1} parent=1 // pred_fallthru
      _
    // Predicated region
    $region46: #{tpu_custom_call.1} parent=1 // pred_check
      _
    $region47: #{tpu_custom_call.1} parent=1 // pred_check_branch
      %77 = sbr.rel (0) target = $region49
    $region48: #{tpu_custom_call.1} parent=1 // pred_region
      %78 = dma.done [#allocation6], 32
    $region49: #{tpu_custom_call.1} parent=1 // pred_fallthru
      _
    // Predicated region
    $region50: #{tpu_custom_call.1} parent=1 // pred_check
      _
    $region51: #{tpu_custom_call.1} parent=1 // pred_check_branch
      %80 = sbr.rel (0) target = $region53
    $region52: #{tpu_custom_call.1} parent=1 // pred_region
      %81 = dma.done [#allocation9], 128
    $region53: #{tpu_custom_call.1} parent=1 // pred_fallthru
      _
    %v82 = vld [vmem:[%s0] sm:$0xff]
    %v83 = vld [vmem:[#allocation2] sm:$0xff]
    %v84 = vld [vmem:[%s2] sm:$0xff]
    %v85 = vld [vmem:[%s2 + $0x8] sm:$0xff]
    %v86 = vld [vmem:[%s2 + $0x10] sm:$0x1f]
    %v87 = vld [vmem:[%s4 + $0xa] sm:$0x1]
    %v89 = vlaneseq
    %v90 = vshrl.u32 %v89, 7
    %v91 = vsub.s32 0, %v90
    %v92 = vrot.slane %v87, %v91
    %vm94 = vcmask 171008
    %v96 = vsel %vm94, %v82, 0
    %vm98 = vcmask 1044480
    %v100 = vsel %vm98, %v86, 0
    %102 = vmatprep.subr.mxu0 0.0
    %103 = vmatpush1.msra.mxu0 0.0
    %104 = vmatprep.subr.mxu0 0.0
    %105 = vmatpush1.msra.mxu0 0.0
    %106 = vmatprep.subr.mxu0 0.0
    %107 = vmatpush1.msra.mxu0 0.0
    %108 = vmatprep.subr.mxu0 0.0
    %109 = vmatpush1.msra.mxu0 0.0
    %110 = vmatprep.subr.mxu0 0.0
    %111 = vmatpush1.msra.mxu0 0.0
    %112 = vmatprep.subr.mxu0 0.0
    %113 = vmatpush1.msra.mxu0 0.0
    %114 = vmatprep.subr.mxu0 0.0
    %115 = vmatpush1.msra.mxu0 0.0
    %116 = vmatprep.subr.mxu0 0.0
    %117 = vmatpush1.msra.mxu0 0.0
    %118 = vmatprep.subr.mxu0 0.0
    %119 = vmatpush1.msra.mxu0 0.0
    %120 = vmatprep.subr.mxu0 0.0
    %121 = vmatpush1.msra.mxu0 0.0
    %122 = vmatprep.subr.mxu0 0.0
    %123 = vmatpush1.msra.mxu0 0.0
    %124 = vmatprep.subr.mxu0 0.0
    %125 = vmatpush1.msra.mxu0 0.0
    %126 = vmatprep.subr.mxu0 0.0
    %127 = vmatpush1.msra.mxu0 0.0
    %128 = vmatprep.subr.mxu0 0.0
    %129 = vmatpush1.msra.mxu0 %v100
    %130 = vmatprep.subr.mxu0 0.0
    %131 = vmatpush1.msra.mxu0 %v85
    %132 = vmatprep.subr.mxu0 0.0
    %133 = vmatpush1.msra.mxu0 %v84
    %134 = vmatprep.subr.mxu0 0.0
    %135 = vmatpush2.msra.mxu0 0.0
    %136 = vmatprep.subr.mxu0 0.0
    %137 = vmatpush2.msra.mxu0 0.0
    %138 = vmatprep.subr.mxu0 0.0
    %139 = vmatpush2.msra.mxu0 0.0
    %140 = vmatprep.subr.mxu0 0.0
    %141 = vmatpush2.msra.mxu0 0.0
    %142 = vmatprep.subr.mxu0 0.0
    %143 = vmatpush2.msra.mxu0 0.0
    %144 = vmatprep.subr.mxu0 0.0
    %145 = vmatpush2.msra.mxu0 0.0
    %146 = vmatprep.subr.mxu0 0.0
    %147 = vmatpush2.msra.mxu0 0.0
    %148 = vmatprep.subr.mxu0 0.0
    %149 = vmatpush2.msra.mxu0 0.0
    %150 = vmatprep.subr.mxu0 0.0
    %151 = vmatpush2.msra.mxu0 0.0
    %152 = vmatprep.subr.mxu0 0.0
    %153 = vmatpush2.msra.mxu0 0.0
    %154 = vmatprep.subr.mxu0 0.0
    %155 = vmatpush2.msra.mxu0 0.0
    %156 = vmatprep.subr.mxu0 0.0
    %157 = vmatpush2.msra.mxu0 0.0
    %158 = vmatprep.subr.mxu0 0.0
    %159 = vmatpush2.msra.mxu0 0.0
    %160 = vmatprep.subr.mxu0 0.0
    %161 = vmatpush2.msra.mxu0 0.0
    %162 = vmatprep.subr.mxu0 0.0
    %163 = vmatpush2.msra.mxu0 0.0
    %164 = vmatprep.subr.mxu0 0.0
    %165 = vmatpush2.msra.mxu0 0.0
    %166 = vmatprep.mubr.f32.mxu0 0.0
    %167 = vmatmul.mubr.f32.gmra.mxu0 %v96
    %v168 = vpop.f32.mrf.mxu0
    %v169 = vadd.f32 %v92, %v168
    %v170 = vpop.f32.mrf.mxu0
    %171 = vdwg.mxu0
    %vm172 = vcmp.ge.f32.partialorder %v169, 0.0
    %v173 = vmul.f32 %v169, 0.01
    %v174 = vsel %vm172, %v169, %v173
    %v175 = vld [vmem:[#allocation5] sm:$0xff]
    %v176 = vld [vmem:[#allocation5 + $0x50] sm:$0xff]
    %v177 = vld [vmem:[#allocation5 + $0xa0] sm:$0xff]
    %v178 = vld [vmem:[#allocation5 + $0xf0] sm:$0xff]
    %v179 = vld [vmem:[%s4] sm:$0x1]
    %v181 = vlaneseq
    %v182 = vshrl.u32 %v181, 7
    %v183 = vsub.s32 0, %v182
    %v184 = vrot.slane %v179, %v183
    %vm186 = vcmask 261120
    %v188 = vsel %vm186, %v174, 0
    %190 = vmatprep.subr.mxu0 0.0
    %191 = vmatpush1.msra.mxu0 0.0
    %192 = vmatprep.subr.mxu0 0.0
    %193 = vmatpush1.msra.mxu0 0.0
    %194 = vmatprep.subr.mxu0 0.0
    %195 = vmatpush1.msra.mxu0 0.0
    %196 = vmatprep.subr.mxu0 0.0
    %197 = vmatpush1.msra.mxu0 0.0
    %198 = vmatprep.subr.mxu0 0.0
    %199 = vmatpush1.msra.mxu0 0.0
    %200 = vmatprep.subr.mxu0 0.0
    %201 = vmatpush1.msra.mxu0 0.0
    %202 = vmatprep.subr.mxu0 0.0
    %203 = vmatpush1.msra.mxu0 0.0
    %204 = vmatprep.subr.mxu0 0.0
    %205 = vmatpush1.msra.mxu0 0.0
    %206 = vmatprep.subr.mxu0 0.0
    %207 = vmatpush1.msra.mxu0 0.0
    %208 = vmatprep.subr.mxu0 0.0
    %209 = vmatpush1.msra.mxu0 0.0
    %210 = vmatprep.subr.mxu0 0.0
    %211 = vmatpush1.msra.mxu0 0.0
    %212 = vmatprep.subr.mxu0 0.0
    %213 = vmatpush1.msra.mxu0 0.0
    %214 = vmatprep.subr.mxu0 0.0
    %215 = vmatpush1.msra.mxu0 %v178
    %216 = vmatprep.subr.mxu0 0.0
    %217 = vmatpush1.msra.mxu0 %v177
    %218 = vmatprep.subr.mxu0 0.0
    %219 = vmatpush1.msra.mxu0 %v176
    %220 = vmatprep.subr.mxu0 0.0
    %221 = vmatpush1.msra.mxu0 %v175
    %222 = vmatprep.subr.mxu0 0.0
    %223 = vmatpush2.msra.mxu0 0.0
    %224 = vmatprep.subr.mxu0 0.0
    %225 = vmatpush2.msra.mxu0 0.0
    %226 = vmatprep.subr.mxu0 0.0
    %227 = vmatpush2.msra.mxu0 0.0
    %228 = vmatprep.subr.mxu0 0.0
    %229 = vmatpush2.msra.mxu0 0.0
    %230 = vmatprep.subr.mxu0 0.0
    %231 = vmatpush2.msra.mxu0 0.0
    %232 = vmatprep.subr.mxu0 0.0
    %233 = vmatpush2.msra.mxu0 0.0
    %234 = vmatprep.subr.mxu0 0.0
    %235 = vmatpush2.msra.mxu0 0.0
    %236 = vmatprep.subr.mxu0 0.0
    %237 = vmatpush2.msra.mxu0 0.0
    %238 = vmatprep.subr.mxu0 0.0
    %239 = vmatpush2.msra.mxu0 0.0
    %240 = vmatprep.subr.mxu0 0.0
    %241 = vmatpush2.msra.mxu0 0.0
    %242 = vmatprep.subr.mxu0 0.0
    %243 = vmatpush2.msra.mxu0 0.0
    %244 = vmatprep.subr.mxu0 0.0
    %245 = vmatpush2.msra.mxu0 0.0
    %246 = vmatprep.subr.mxu0 0.0
    %247 = vmatpush2.msra.mxu0 0.0
    %248 = vmatprep.subr.mxu0 0.0
    %249 = vmatpush2.msra.mxu0 0.0
    %250 = vmatprep.subr.mxu0 0.0
    %251 = vmatpush2.msra.mxu0 0.0
    %252 = vmatprep.subr.mxu0 0.0
    %253 = vmatpush2.msra.mxu0 0.0
    %254 = vmatprep.mubr.f32.mxu0 0.0
    %255 = vmatmul.mubr.f32.gmra.mxu0 %v188
    %v256 = vpop.f32.mrf.mxu0
    %v257 = vadd.f32 %v184, %v256
    %v258 = vpop.f32.mrf.mxu0
    %259 = vdwg.mxu0
    %v260 = vld [vmem:[#allocation5 + $0x8] sm:$0xff]
    %v261 = vld [vmem:[#allocation5 + $0x58] sm:$0xff]
    %v262 = vld [vmem:[#allocation5 + $0xa8] sm:$0xff]
    %v263 = vld [vmem:[#allocation5 + $0xf8] sm:$0xff]
    %v264 = vld [vmem:[%s4 + $0x1] sm:$0x1]
    %v266 = vlaneseq
    %v267 = vshrl.u32 %v266, 7
    %v268 = vsub.s32 0, %v267
    %v269 = vrot.slane %v264, %v268
    %v272 = vsel %vm186, %v83, 0
    %274 = vmatprep.subr.mxu0 0.0
    %275 = vmatpush1.msra.mxu0 0.0
    %276 = vmatprep.subr.mxu0 0.0
    %277 = vmatpush1.msra.mxu0 0.0
    %278 = vmatprep.subr.mxu0 0.0
    %279 = vmatpush1.msra.mxu0 0.0
    %280 = vmatprep.subr.mxu0 0.0
    %281 = vmatpush1.msra.mxu0 0.0
    %282 = vmatprep.subr.mxu0 0.0
    %283 = vmatpush1.msra.mxu0 0.0
    %284 = vmatprep.subr.mxu0 0.0
    %285 = vmatpush1.msra.mxu0 0.0
    %286 = vmatprep.subr.mxu0 0.0
    %287 = vmatpush1.msra.mxu0 0.0
    %288 = vmatprep.subr.mxu0 0.0
    %289 = vmatpush1.msra.mxu0 0.0
    %290 = vmatprep.subr.mxu0 0.0
    %291 = vmatpush1.msra.mxu0 0.0
    %292 = vmatprep.subr.mxu0 0.0
    %293 = vmatpush1.msra.mxu0 0.0
    %294 = vmatprep.subr.mxu0 0.0
    %295 = vmatpush1.msra.mxu0 0.0
    %296 = vmatprep.subr.mxu0 0.0
    %297 = vmatpush1.msra.mxu0 0.0
    %298 = vmatprep.subr.mxu0 0.0
    %299 = vmatpush1.msra.mxu0 %v263
    %300 = vmatprep.subr.mxu0 0.0
    %301 = vmatpush1.msra.mxu0 %v262
    %302 = vmatprep.subr.mxu0 0.0
    %303 = vmatpush1.msra.mxu0 %v261
    %304 = vmatprep.subr.mxu0 0.0
    %305 = vmatpush1.msra.mxu0 %v260
    %306 = vmatprep.subr.mxu0 0.0
    %307 = vmatpush2.msra.mxu0 0.0
    %308 = vmatprep.subr.mxu0 0.0
    %309 = vmatpush2.msra.mxu0 0.0
    %310 = vmatprep.subr.mxu0 0.0
    %311 = vmatpush2.msra.mxu0 0.0
    %312 = vmatprep.subr.mxu0 0.0
    %313 = vmatpush2.msra.mxu0 0.0
    %314 = vmatprep.subr.mxu0 0.0
    %315 = vmatpush2.msra.mxu0 0.0
    %316 = vmatprep.subr.mxu0 0.0
    %317 = vmatpush2.msra.mxu0 0.0
    %318 = vmatprep.subr.mxu0 0.0
    %319 = vmatpush2.msra.mxu0 0.0
    %320 = vmatprep.subr.mxu0 0.0
    %321 = vmatpush2.msra.mxu0 0.0
    %322 = vmatprep.subr.mxu0 0.0
    %323 = vmatpush2.msra.mxu0 0.0
    %324 = vmatprep.subr.mxu0 0.0
    %325 = vmatpush2.msra.mxu0 0.0
    %326 = vmatprep.subr.mxu0 0.0
    %327 = vmatpush2.msra.mxu0 0.0
    %328 = vmatprep.subr.mxu0 0.0
    %329 = vmatpush2.msra.mxu0 0.0
    %330 = vmatprep.subr.mxu0 0.0
    %331 = vmatpush2.msra.mxu0 0.0
    %332 = vmatprep.subr.mxu0 0.0
    %333 = vmatpush2.msra.mxu0 0.0
    %334 = vmatprep.subr.mxu0 0.0
    %335 = vmatpush2.msra.mxu0 0.0
    %336 = vmatprep.subr.mxu0 0.0
    %337 = vmatpush2.msra.mxu0 0.0
    %338 = vmatprep.mubr.f32.mxu0 0.0
    %339 = vmatmul.mubr.f32.gmra.mxu0 %v272
    %v340 = vpop.f32.mrf.mxu0
    %v341 = vadd.f32 %v269, %v340
    %v342 = vpop.f32.mrf.mxu0
    %343 = vdwg.mxu0
    %v344 = vadd.f32 %v257, %v341
    %v345 = vxor.u32 %v344, 2147483648
    %v346 = vmul.f32 %v345, 1.442695
    %v347 = vpow.pop %v346
    %v348 = vadd.f32 %v347, 1.0
    %v349 = vrcp.pop %v348
    %v350 = vmul.f32 1.0, %v349
    %352 = vrot.lane.b32.xlu0 %v341, 64
    %v353 = vpop.permute.xlu0 %352
    %v355 = vmul.f32 %v350, %v353
    %357 = vrot.lane.b32.xlu0 %v355, 64
    %v358 = vpop.permute.xlu0 %357
    %v360 = vadd.f32 %v257, %v358
    %v361 = vtanh.pop %v360
    %v362 = vsub.f32 1.0, %v350
    %364 = vrot.lane.b32.xlu0 %v361, 96
    %v365 = vpop.permute.xlu0 %364
    %v367 = vmul.f32 %v362, %v365
    %368 = vrot.lane.b32.xlu0 %v83, 32
    %v369 = vpop.permute.xlu0 %368
    %v371 = vmul.f32 %v350, %v369
    %v372 = vadd.f32 %v367, %v371
    %v373 = vld [vmem:[#allocation5 + $0x10] sm:$0xff]
    %v374 = vld [vmem:[#allocation5 + $0x60] sm:$0xff]
    %v375 = vld [vmem:[#allocation5 + $0xb0] sm:$0xff]
    %v376 = vld [vmem:[#allocation5 + $0x100] sm:$0xff]
    %v377 = vld [vmem:[%s4 + $0x2] sm:$0x1]
    %v379 = vlaneseq
    %v380 = vshrl.u32 %v379, 7
    %v381 = vsub.s32 0, %v380
    %v382 = vrot.slane %v377, %v381
    %385 = vrot.lane.b32.xlu0 %v372, 96
    %v386 = vpop.permute.xlu0 %385
    %v387 = vsel %vm186, %v386, 0
    %389 = vmatprep.subr.mxu0 0.0
    %390 = vmatpush1.msra.mxu0 0.0
    %391 = vmatprep.subr.mxu0 0.0
    %392 = vmatpush1.msra.mxu0 0.0
    %393 = vmatprep.subr.mxu0 0.0
    %394 = vmatpush1.msra.mxu0 0.0
    %395 = vmatprep.subr.mxu0 0.0
    %396 = vmatpush1.msra.mxu0 0.0
    %397 = vmatprep.subr.mxu0 0.0
    %398 = vmatpush1.msra.mxu0 0.0
    %399 = vmatprep.subr.mxu0 0.0
    %400 = vmatpush1.msra.mxu0 0.0
    %401 = vmatprep.subr.mxu0 0.0
    %402 = vmatpush1.msra.mxu0 0.0
    %403 = vmatprep.subr.mxu0 0.0
    %404 = vmatpush1.msra.mxu0 0.0
    %405 = vmatprep.subr.mxu0 0.0
    %406 = vmatpush1.msra.mxu0 0.0
    %407 = vmatprep.subr.mxu0 0.0
    %408 = vmatpush1.msra.mxu0 0.0
    %409 = vmatprep.subr.mxu0 0.0
    %410 = vmatpush1.msra.mxu0 0.0
    %411 = vmatprep.subr.mxu0 0.0
    %412 = vmatpush1.msra.mxu0 0.0
    %413 = vmatprep.subr.mxu0 0.0
    %414 = vmatpush1.msra.mxu0 %v376
    %415 = vmatprep.subr.mxu0 0.0
    %416 = vmatpush1.msra.mxu0 %v375
    %417 = vmatprep.subr.mxu0 0.0
    %418 = vmatpush1.msra.mxu0 %v374
    %419 = vmatprep.subr.mxu0 0.0
    %420 = vmatpush1.msra.mxu0 %v373
    %421 = vmatprep.subr.mxu0 0.0
    %422 = vmatpush2.msra.mxu0 0.0
    %423 = vmatprep.subr.mxu0 0.0
    %424 = vmatpush2.msra.mxu0 0.0
    %425 = vmatprep.subr.mxu0 0.0
    %426 = vmatpush2.msra.mxu0 0.0
    %427 = vmatprep.subr.mxu0 0.0
    %428 = vmatpush2.msra.mxu0 0.0
    %429 = vmatprep.subr.mxu0 0.0
    %430 = vmatpush2.msra.mxu0 0.0
    %431 = vmatprep.subr.mxu0 0.0
    %432 = vmatpush2.msra.mxu0 0.0
    %433 = vmatprep.subr.mxu0 0.0
    %434 = vmatpush2.msra.mxu0 0.0
    %435 = vmatprep.subr.mxu0 0.0
    %436 = vmatpush2.msra.mxu0 0.0
    %437 = vmatprep.subr.mxu0 0.0
    %438 = vmatpush2.msra.mxu0 0.0
    %439 = vmatprep.subr.mxu0 0.0
    %440 = vmatpush2.msra.mxu0 0.0
    %441 = vmatprep.subr.mxu0 0.0
    %442 = vmatpush2.msra.mxu0 0.0
    %443 = vmatprep.subr.mxu0 0.0
    %444 = vmatpush2.msra.mxu0 0.0
    %445 = vmatprep.subr.mxu0 0.0
    %446 = vmatpush2.msra.mxu0 0.0
    %447 = vmatprep.subr.mxu0 0.0
    %448 = vmatpush2.msra.mxu0 0.0
    %449 = vmatprep.subr.mxu0 0.0
    %450 = vmatpush2.msra.mxu0 0.0
    %451 = vmatprep.subr.mxu0 0.0
    %452 = vmatpush2.msra.mxu0 0.0
    %453 = vmatprep.mubr.f32.mxu0 0.0
    %454 = vmatmul.mubr.f32.gmra.mxu0 %v387
    %v455 = vpop.f32.mrf.mxu0
    %v456 = vadd.f32 %v382, %v455
    %v457 = vpop.f32.mrf.mxu0
    %458 = vdwg.mxu0
    %v459 = vld [vmem:[#allocation7] sm:$0x1]
    %460 = vset.pattern.permute.xlu0 20
    %461 = vperm.xlu0 %460, %v82
    %v462 = vpop.permute.xlu0 %461
    %v464 = vlaneseq
    %v465 = vshrl.u32 %v464, 7
    %v466 = vsub.s32 0, %v465
    %v467 = vrot.slane %v459, %v466
    %v468 = vmul.f32 %v462, %v467
    %v469 = vld [vmem:[#allocation7 + $0x1] sm:$0x1]
    %v470 = vlaneseq
    %v471 = vshrl.u32 %v470, 7
    %v472 = vsub.s32 0, %v471
    %v473 = vrot.slane %v469, %v472
    %v474 = vadd.f32 %v468, %v473
    %v475 = vand.u32 2147483647, %v474
    %vm476 = vcmp.le.f32.partialorder %v475, 0.7853982
    %vm477 = vcmp.lt.s32.totalorder %v474, 0
    %v478 = vand.u32 %v474, 2139095040
    %v479 = vshrl.u32 %v478, 23
    %v480 = vsub.s32 %v479, 127
    %v481 = vand.u32 2147483647, %v474
    %v482 = vand.u32 %v481, 8388607
    %v483 = vor.u32 %v482, 8388608
    %v484 = vsub.s32 0, %v483
    %v485 = vadd.s32 %v480, 1
    %vm486 = vcmp.gt.s32.totalorder %v485, 0
    %v487 = vsel %vm486, %v485, 0
    %v488 = vshrl.u32 %v487, 5
    %v489 = vand.u32 %v487, 31
    %v490 = vsub.s32 32, %v489
    %v491 = vshrl.u32 683565275, %v490
    %v492 = vshll.u32 683565275, %v489
    %v493 = vshrl.u32 2475754826, %v490
    %v494 = vor.u32 %v492, %v493
    %v495 = vshll.u32 2475754826, %v489
    %v496 = vshrl.u32 2131351028, %v490
    %v497 = vor.u32 %v495, %v496
    %v498 = vshll.u32 2131351028, %v489
    %v499 = vshrl.u32 2102212464, %v490
    %v500 = vor.u32 %v498, %v499
    %v501 = vshll.u32 2102212464, %v489
    %v502 = vshrl.u32 920167782, %v490
    %v503 = vor.u32 %v501, %v502
    %v504 = vshll.u32 920167782, %v489
    %v505 = vshrl.u32 1326507024, %v490
    %v506 = vor.u32 %v504, %v505
    %vm507 = vcmp.lt.s32.totalorder %v488, 1
    %vm508 = vcmp.lt.s32.totalorder %v488, 2
    %vm509 = vcmp.lt.s32.totalorder %v488, 3
    %vm510 = vcmp.lt.s32.totalorder %v488, 4
    %v511 = vsel %vm507, %v491, %v494
    %v512 = vsel %vm510, %v500, 2102212464
    %v513 = vsel %vm509, %v497, %v512
    %v514 = vsel %vm508, %v511, %v513
    %v515 = vsel %vm507, %v494, %v497
    %v516 = vsel %vm510, %v503, 920167782
    %v517 = vsel %vm509, %v500, %v516
    %v518 = vsel %vm508, %v515, %v517
    %v519 = vsel %vm507, %v497, %v500
    %v520 = vsel %vm510, %v506, 1326507024
    %v521 = vsel %vm509, %v503, %v520
    %v522 = vsel %vm508, %v519, %v521
    %v523 = vshll.u32 %v483, 8
    %v524 = vmul.u32.u64.compose %v523, %v522
    %v525 = vextract.low.u32 %v524
    %v526 = vextract.high.u32 %v524
    %v527 = vmul.u32.u64.compose %v523, %v518
    %v528 = vextract.low.u32 %v527
    %v529 = vextract.high.u32 %v527
    %v530 = vmul.u32 %v523, %v514
    %v531 = vadd.s32 %v526, %v528
    %vm532 = vc.u32 %v526, %v528
    %v533 = vadd.s32 %v529, 1
    %v534 = vsel %vm532, %v533, %v529
    %v535 = vadd.s32 %v530, %v534
    %v536 = vadd.s32 %v535, 536870912
    %v537 = vshrl.u32 %v536, 30
    %v538 = vshll.u32 %v537, 30
    %v539 = vsub.s32 %v535, %v538
    %vm540 = vcmp.lt.s32.totalorder %v539, 0
    %v541 = vsub.s32 0, %v539
    %v542 = vsel %vm540, %v541, %v539
    %v543 = vclz %v542
    %v544 = vsub.s32 %v543, 2
    %vm545 = vcmp.gt.s32.totalorder 0, %v544
    %v546 = vsel %vm545, 0, %v544
    %v547 = vsub.s32 32, %v546
    %v548 = vshll.u32 %v539, %v546
    %v549 = vshrl.u32 %v531, %v547
    %v550 = vor.u32 %v548, %v549
    %v551 = vsub.s32 4294967266, %v546
    %v552 = vadd.s32 %v551, 127
    %v553 = vshll.u32 %v552, 23
    %v554 = vor.u32 4788187, %v553
    %v555 = vand.u32 2147483647, %v554
    %v557 = vcvt.s32.f32 %v550
    %v558 = vmul.f32 %v557, %v555
    %v559 = vxor.u32 %v558, 2147483648
    %v560 = vsel %vm477, %v559, %v558
    %v561 = vsub.s32 4, %v537
    %v562 = vsel %vm477, %v561, %v537
    %v563 = vsel %vm476, %v474, %v560
    %v564 = vsel %vm476, 0, %v562
    %v565 = vcosq.f32.pop %v563
    %v566 = vsinq.f32.pop %v563
    %vm567 = vweird.f32 %v474
    %v568 = vadd.s32 %v564, 3
    %v569 = vand.u32 %v568, 3
    %vm570 = vcmp.lt.s32.totalorder %v569, 2
    %vm571 = vcmp.eq.s32.totalorder %v569, 0
    %v572 = vxor.u32 %v566, 2147483648
    %v573 = vsel %vm571, %v565, %v572
    %vm574 = vcmp.eq.s32.totalorder %v569, 2
    %v575 = vxor.u32 %v565, 2147483648
    %v576 = vsel %vm574, %v575, %v566
    %v577 = vsel %vm570, %v573, %v576
    %v578 = vsel %vm567, nan, %v577
    %v579 = vld [vmem:[#allocation5 + $0x18] sm:$0xff]
    %v580 = vld [vmem:[#allocation5 + $0x68] sm:$0xff]
    %v581 = vld [vmem:[#allocation5 + $0xb8] sm:$0xff]
    %v582 = vld [vmem:[#allocation5 + $0x108] sm:$0xff]
    %v583 = vld [vmem:[%s4 + $0x3] sm:$0x1]
    %v585 = vlaneseq
    %v586 = vshrl.u32 %v585, 7
    %v587 = vsub.s32 0, %v586
    %v588 = vrot.slane %v583, %v587
    %v591 = vsel %vm186, %v578, 0
    %593 = vmatprep.subr.mxu0 0.0
    %594 = vmatpush1.msra.mxu0 0.0
    %595 = vmatprep.subr.mxu0 0.0
    %596 = vmatpush1.msra.mxu0 0.0
    %597 = vmatprep.subr.mxu0 0.0
    %598 = vmatpush1.msra.mxu0 0.0
    %599 = vmatprep.subr.mxu0 0.0
    %600 = vmatpush1.msra.mxu0 0.0
    %601 = vmatprep.subr.mxu0 0.0
    %602 = vmatpush1.msra.mxu0 0.0
    %603 = vmatprep.subr.mxu0 0.0
    %604 = vmatpush1.msra.mxu0 0.0
    %605 = vmatprep.subr.mxu0 0.0
    %606 = vmatpush1.msra.mxu0 0.0
    %607 = vmatprep.subr.mxu0 0.0
    %608 = vmatpush1.msra.mxu0 0.0
    %609 = vmatprep.subr.mxu0 0.0
    %610 = vmatpush1.msra.mxu0 0.0
    %611 = vmatprep.subr.mxu0 0.0
    %612 = vmatpush1.msra.mxu0 0.0
    %613 = vmatprep.subr.mxu0 0.0
    %614 = vmatpush1.msra.mxu0 0.0
    %615 = vmatprep.subr.mxu0 0.0
    %616 = vmatpush1.msra.mxu0 0.0
    %617 = vmatprep.subr.mxu0 0.0
    %618 = vmatpush1.msra.mxu0 %v582
    %619 = vmatprep.subr.mxu0 0.0
    %620 = vmatpush1.msra.mxu0 %v581
    %621 = vmatprep.subr.mxu0 0.0
    %622 = vmatpush1.msra.mxu0 %v580
    %623 = vmatprep.subr.mxu0 0.0
    %624 = vmatpush1.msra.mxu0 %v579
    %625 = vmatprep.subr.mxu0 0.0
    %626 = vmatpush2.msra.mxu0 0.0
    %627 = vmatprep.subr.mxu0 0.0
    %628 = vmatpush2.msra.mxu0 0.0
    %629 = vmatprep.subr.mxu0 0.0
    %630 = vmatpush2.msra.mxu0 0.0
    %631 = vmatprep.subr.mxu0 0.0
    %632 = vmatpush2.msra.mxu0 0.0
    %633 = vmatprep.subr.mxu0 0.0
    %634 = vmatpush2.msra.mxu0 0.0
    %635 = vmatprep.subr.mxu0 0.0
    %636 = vmatpush2.msra.mxu0 0.0
    %637 = vmatprep.subr.mxu0 0.0
    %638 = vmatpush2.msra.mxu0 0.0
    %639 = vmatprep.subr.mxu0 0.0
    %640 = vmatpush2.msra.mxu0 0.0
    %641 = vmatprep.subr.mxu0 0.0
    %642 = vmatpush2.msra.mxu0 0.0
    %643 = vmatprep.subr.mxu0 0.0
    %644 = vmatpush2.msra.mxu0 0.0
    %645 = vmatprep.subr.mxu0 0.0
    %646 = vmatpush2.msra.mxu0 0.0
    %647 = vmatprep.subr.mxu0 0.0
    %648 = vmatpush2.msra.mxu0 0.0
    %649 = vmatprep.subr.mxu0 0.0
    %650 = vmatpush2.msra.mxu0 0.0
    %651 = vmatprep.subr.mxu0 0.0
    %652 = vmatpush2.msra.mxu0 0.0
    %653 = vmatprep.subr.mxu0 0.0
    %654 = vmatpush2.msra.mxu0 0.0
    %655 = vmatprep.subr.mxu0 0.0
    %656 = vmatpush2.msra.mxu0 0.0
    %657 = vmatprep.mubr.f32.mxu0 0.0
    %658 = vmatmul.mubr.f32.gmra.mxu0 %v591
    %v659 = vpop.f32.mrf.mxu0
    %v660 = vadd.f32 %v588, %v659
    %v661 = vpop.f32.mrf.mxu0
    %662 = vdwg.mxu0
    %v663 = vxor.u32 %v660, 2147483648
    %v664 = vmul.f32 %v663, 1.442695
    %v665 = vpow.pop %v664
    %v666 = vadd.f32 %v665, 1.0
    %v667 = vrcp.pop %v666
    %v668 = vmul.f32 1.0, %v667
    %v669 = vmul.f32 %v660, %v668
    %v670 = vld [vmem:[#allocation5 + $0x20] sm:$0xff]
    %v671 = vld [vmem:[#allocation5 + $0x70] sm:$0xff]
    %v672 = vld [vmem:[#allocation5 + $0xc0] sm:$0xff]
    %v673 = vld [vmem:[#allocation5 + $0x110] sm:$0xff]
    %v674 = vld [vmem:[%s4 + $0x4] sm:$0x1]
    %v676 = vlaneseq
    %v677 = vshrl.u32 %v676, 7
    %v678 = vsub.s32 0, %v677
    %v679 = vrot.slane %v674, %v678
    %v682 = vsel %vm186, %v669, 0
    %684 = vmatprep.subr.mxu0 0.0
    %685 = vmatpush1.msra.mxu0 0.0
    %686 = vmatprep.subr.mxu0 0.0
    %687 = vmatpush1.msra.mxu0 0.0
    %688 = vmatprep.subr.mxu0 0.0
    %689 = vmatpush1.msra.mxu0 0.0
    %690 = vmatprep.subr.mxu0 0.0
    %691 = vmatpush1.msra.mxu0 0.0
    %692 = vmatprep.subr.mxu0 0.0
    %693 = vmatpush1.msra.mxu0 0.0
    %694 = vmatprep.subr.mxu0 0.0
    %695 = vmatpush1.msra.mxu0 0.0
    %696 = vmatprep.subr.mxu0 0.0
    %697 = vmatpush1.msra.mxu0 0.0
    %698 = vmatprep.subr.mxu0 0.0
    %699 = vmatpush1.msra.mxu0 0.0
    %700 = vmatprep.subr.mxu0 0.0
    %701 = vmatpush1.msra.mxu0 0.0
    %702 = vmatprep.subr.mxu0 0.0
    %703 = vmatpush1.msra.mxu0 0.0
    %704 = vmatprep.subr.mxu0 0.0
    %705 = vmatpush1.msra.mxu0 0.0
    %706 = vmatprep.subr.mxu0 0.0
    %707 = vmatpush1.msra.mxu0 0.0
    %708 = vmatprep.subr.mxu0 0.0
    %709 = vmatpush1.msra.mxu0 %v673
    %710 = vmatprep.subr.mxu0 0.0
    %711 = vmatpush1.msra.mxu0 %v672
    %712 = vmatprep.subr.mxu0 0.0
    %713 = vmatpush1.msra.mxu0 %v671
    %714 = vmatprep.subr.mxu0 0.0
    %715 = vmatpush1.msra.mxu0 %v670
    %716 = vmatprep.subr.mxu0 0.0
    %717 = vmatpush2.msra.mxu0 0.0
    %718 = vmatprep.subr.mxu0 0.0
    %719 = vmatpush2.msra.mxu0 0.0
    %720 = vmatprep.subr.mxu0 0.0
    %721 = vmatpush2.msra.mxu0 0.0
    %722 = vmatprep.subr.mxu0 0.0
    %723 = vmatpush2.msra.mxu0 0.0
    %724 = vmatprep.subr.mxu0 0.0
    %725 = vmatpush2.msra.mxu0 0.0
    %726 = vmatprep.subr.mxu0 0.0
    %727 = vmatpush2.msra.mxu0 0.0
    %728 = vmatprep.subr.mxu0 0.0
    %729 = vmatpush2.msra.mxu0 0.0
    %730 = vmatprep.subr.mxu0 0.0
    %731 = vmatpush2.msra.mxu0 0.0
    %732 = vmatprep.subr.mxu0 0.0
    %733 = vmatpush2.msra.mxu0 0.0
    %734 = vmatprep.subr.mxu0 0.0
    %735 = vmatpush2.msra.mxu0 0.0
    %736 = vmatprep.subr.mxu0 0.0
    %737 = vmatpush2.msra.mxu0 0.0
    %738 = vmatprep.subr.mxu0 0.0
    %739 = vmatpush2.msra.mxu0 0.0
    %740 = vmatprep.subr.mxu0 0.0
    %741 = vmatpush2.msra.mxu0 0.0
    %742 = vmatprep.subr.mxu0 0.0
    %743 = vmatpush2.msra.mxu0 0.0
    %744 = vmatprep.subr.mxu0 0.0
    %745 = vmatpush2.msra.mxu0 0.0
    %746 = vmatprep.subr.mxu0 0.0
    %747 = vmatpush2.msra.mxu0 0.0
    %748 = vmatprep.mubr.f32.mxu0 0.0
    %749 = vmatmul.mubr.f32.gmra.mxu0 %v682
    %v750 = vpop.f32.mrf.mxu0
    %v751 = vadd.f32 %v679, %v750
    %v752 = vpop.f32.mrf.mxu0
    %753 = vdwg.mxu0
    %755 = vrot.lane.b32.xlu0 %v169, 96
    %v756 = vpop.permute.xlu0 %755
    %v758 = vadd.f32 %v751, %v756
    %v759 = vld [vmem:[#allocation5 + $0x28] sm:$0xff]
    %v760 = vld [vmem:[#allocation5 + $0x78] sm:$0xff]
    %v761 = vld [vmem:[#allocation5 + $0xc8] sm:$0xff]
    %v762 = vld [vmem:[#allocation5 + $0x118] sm:$0xff]
    %v763 = vld [vmem:[%s4 + $0x5] sm:$0x1]
    %v765 = vlaneseq
    %v766 = vshrl.u32 %v765, 7
    %v767 = vsub.s32 0, %v766
    %v768 = vrot.slane %v763, %v767
    %v771 = vsel %vm186, %v758, 0
    %773 = vmatprep.subr.mxu0 0.0
    %774 = vmatpush1.msra.mxu0 0.0
    %775 = vmatprep.subr.mxu0 0.0
    %776 = vmatpush1.msra.mxu0 0.0
    %777 = vmatprep.subr.mxu0 0.0
    %778 = vmatpush1.msra.mxu0 0.0
    %779 = vmatprep.subr.mxu0 0.0
    %780 = vmatpush1.msra.mxu0 0.0
    %781 = vmatprep.subr.mxu0 0.0
    %782 = vmatpush1.msra.mxu0 0.0
    %783 = vmatprep.subr.mxu0 0.0
    %784 = vmatpush1.msra.mxu0 0.0
    %785 = vmatprep.subr.mxu0 0.0
    %786 = vmatpush1.msra.mxu0 0.0
    %787 = vmatprep.subr.mxu0 0.0
    %788 = vmatpush1.msra.mxu0 0.0
    %789 = vmatprep.subr.mxu0 0.0
    %790 = vmatpush1.msra.mxu0 0.0
    %791 = vmatprep.subr.mxu0 0.0
    %792 = vmatpush1.msra.mxu0 0.0
    %793 = vmatprep.subr.mxu0 0.0
    %794 = vmatpush1.msra.mxu0 0.0
    %795 = vmatprep.subr.mxu0 0.0
    %796 = vmatpush1.msra.mxu0 0.0
    %797 = vmatprep.subr.mxu0 0.0
    %798 = vmatpush1.msra.mxu0 %v762
    %799 = vmatprep.subr.mxu0 0.0
    %800 = vmatpush1.msra.mxu0 %v761
    %801 = vmatprep.subr.mxu0 0.0
    %802 = vmatpush1.msra.mxu0 %v760
    %803 = vmatprep.subr.mxu0 0.0
    %804 = vmatpush1.msra.mxu0 %v759
    %805 = vmatprep.subr.mxu0 0.0
    %806 = vmatpush2.msra.mxu0 0.0
    %807 = vmatprep.subr.mxu0 0.0
    %808 = vmatpush2.msra.mxu0 0.0
    %809 = vmatprep.subr.mxu0 0.0
    %810 = vmatpush2.msra.mxu0 0.0
    %811 = vmatprep.subr.mxu0 0.0
    %812 = vmatpush2.msra.mxu0 0.0
    %813 = vmatprep.subr.mxu0 0.0
    %814 = vmatpush2.msra.mxu0 0.0
    %815 = vmatprep.subr.mxu0 0.0
    %816 = vmatpush2.msra.mxu0 0.0
    %817 = vmatprep.subr.mxu0 0.0
    %818 = vmatpush2.msra.mxu0 0.0
    %819 = vmatprep.subr.mxu0 0.0
    %820 = vmatpush2.msra.mxu0 0.0
    %821 = vmatprep.subr.mxu0 0.0
    %822 = vmatpush2.msra.mxu0 0.0
    %823 = vmatprep.subr.mxu0 0.0
    %824 = vmatpush2.msra.mxu0 0.0
    %825 = vmatprep.subr.mxu0 0.0
    %826 = vmatpush2.msra.mxu0 0.0
    %827 = vmatprep.subr.mxu0 0.0
    %828 = vmatpush2.msra.mxu0 0.0
    %829 = vmatprep.subr.mxu0 0.0
    %830 = vmatpush2.msra.mxu0 0.0
    %831 = vmatprep.subr.mxu0 0.0
    %832 = vmatpush2.msra.mxu0 0.0
    %833 = vmatprep.subr.mxu0 0.0
    %834 = vmatpush2.msra.mxu0 0.0
    %835 = vmatprep.subr.mxu0 0.0
    %836 = vmatpush2.msra.mxu0 0.0
    %837 = vmatprep.mubr.f32.mxu0 0.0
    %838 = vmatmul.mubr.f32.gmra.mxu0 %v771
    %v839 = vpop.f32.mrf.mxu0
    %v840 = vadd.f32 %v768, %v839
    %v841 = vpop.f32.mrf.mxu0
    %842 = vdwg.mxu0
    %vm843 = vcmp.ge.f32.partialorder %v840, 0.0
    %v844 = vmul.f32 %v840, 0.01
    %v845 = vsel %vm843, %v840, %v844
    %v846 = vld [vmem:[#allocation5 + $0x30] sm:$0xff]
    %v847 = vld [vmem:[#allocation5 + $0x80] sm:$0xff]
    %v848 = vld [vmem:[#allocation5 + $0xd0] sm:$0xff]
    %v849 = vld [vmem:[#allocation5 + $0x120] sm:$0xff]
    %v850 = vld [vmem:[%s4 + $0x6] sm:$0x1]
    %v852 = vlaneseq
    %v853 = vshrl.u32 %v852, 7
    %v854 = vsub.s32 0, %v853
    %v855 = vrot.slane %v850, %v854
    %v858 = vsel %vm186, %v845, 0
    %860 = vmatprep.subr.mxu0 0.0
    %861 = vmatpush1.msra.mxu0 0.0
    %862 = vmatprep.subr.mxu0 0.0
    %863 = vmatpush1.msra.mxu0 0.0
    %864 = vmatprep.subr.mxu0 0.0
    %865 = vmatpush1.msra.mxu0 0.0
    %866 = vmatprep.subr.mxu0 0.0
    %867 = vmatpush1.msra.mxu0 0.0
    %868 = vmatprep.subr.mxu0 0.0
    %869 = vmatpush1.msra.mxu0 0.0
    %870 = vmatprep.subr.mxu0 0.0
    %871 = vmatpush1.msra.mxu0 0.0
    %872 = vmatprep.subr.mxu0 0.0
    %873 = vmatpush1.msra.mxu0 0.0
    %874 = vmatprep.subr.mxu0 0.0
    %875 = vmatpush1.msra.mxu0 0.0
    %876 = vmatprep.subr.mxu0 0.0
    %877 = vmatpush1.msra.mxu0 0.0
    %878 = vmatprep.subr.mxu0 0.0
    %879 = vmatpush1.msra.mxu0 0.0
    %880 = vmatprep.subr.mxu0 0.0
    %881 = vmatpush1.msra.mxu0 0.0
    %882 = vmatprep.subr.mxu0 0.0
    %883 = vmatpush1.msra.mxu0 0.0
    %884 = vmatprep.subr.mxu0 0.0
    %885 = vmatpush1.msra.mxu0 %v849
    %886 = vmatprep.subr.mxu0 0.0
    %887 = vmatpush1.msra.mxu0 %v848
    %888 = vmatprep.subr.mxu0 0.0
    %889 = vmatpush1.msra.mxu0 %v847
    %890 = vmatprep.subr.mxu0 0.0
    %891 = vmatpush1.msra.mxu0 %v846
    %892 = vmatprep.subr.mxu0 0.0
    %893 = vmatpush2.msra.mxu0 0.0
    %894 = vmatprep.subr.mxu0 0.0
    %895 = vmatpush2.msra.mxu0 0.0
    %896 = vmatprep.subr.mxu0 0.0
    %897 = vmatpush2.msra.mxu0 0.0
    %898 = vmatprep.subr.mxu0 0.0
    %899 = vmatpush2.msra.mxu0 0.0
    %900 = vmatprep.subr.mxu0 0.0
    %901 = vmatpush2.msra.mxu0 0.0
    %902 = vmatprep.subr.mxu0 0.0
    %903 = vmatpush2.msra.mxu0 0.0
    %904 = vmatprep.subr.mxu0 0.0
    %905 = vmatpush2.msra.mxu0 0.0
    %906 = vmatprep.subr.mxu0 0.0
    %907 = vmatpush2.msra.mxu0 0.0
    %908 = vmatprep.subr.mxu0 0.0
    %909 = vmatpush2.msra.mxu0 0.0
    %910 = vmatprep.subr.mxu0 0.0
    %911 = vmatpush2.msra.mxu0 0.0
    %912 = vmatprep.subr.mxu0 0.0
    %913 = vmatpush2.msra.mxu0 0.0
    %914 = vmatprep.subr.mxu0 0.0
    %915 = vmatpush2.msra.mxu0 0.0
    %916 = vmatprep.subr.mxu0 0.0
    %917 = vmatpush2.msra.mxu0 0.0
    %918 = vmatprep.subr.mxu0 0.0
    %919 = vmatpush2.msra.mxu0 0.0
    %920 = vmatprep.subr.mxu0 0.0
    %921 = vmatpush2.msra.mxu0 0.0
    %922 = vmatprep.subr.mxu0 0.0
    %923 = vmatpush2.msra.mxu0 0.0
    %924 = vmatprep.mubr.f32.mxu0 0.0
    %925 = vmatmul.mubr.f32.gmra.mxu0 %v858
    %v926 = vpop.f32.mrf.mxu0
    %v927 = vadd.f32 %v855, %v926
    %v928 = vpop.f32.mrf.mxu0
    %929 = vdwg.mxu0
    %vm930 = vcmp.ge.f32.partialorder %v927, 0.0
    %v931 = vmul.f32 %v927, 0.01
    %v932 = vsel %vm930, %v927, %v931
    %v933 = vld [vmem:[#allocation5 + $0x38] sm:$0xff]
    %v934 = vld [vmem:[#allocation5 + $0x88] sm:$0xff]
    %v935 = vld [vmem:[#allocation5 + $0xd8] sm:$0xff]
    %v936 = vld [vmem:[#allocation5 + $0x128] sm:$0xff]
    %v937 = vld [vmem:[%s4 + $0x7] sm:$0x1]
    %v939 = vlaneseq
    %v940 = vshrl.u32 %v939, 7
    %v941 = vsub.s32 0, %v940
    %v942 = vrot.slane %v937, %v941
    %v945 = vsel %vm186, %v932, 0
    %947 = vmatprep.subr.mxu0 0.0
    %948 = vmatpush1.msra.mxu0 0.0
    %949 = vmatprep.subr.mxu0 0.0
    %950 = vmatpush1.msra.mxu0 0.0
    %951 = vmatprep.subr.mxu0 0.0
    %952 = vmatpush1.msra.mxu0 0.0
    %953 = vmatprep.subr.mxu0 0.0
    %954 = vmatpush1.msra.mxu0 0.0
    %955 = vmatprep.subr.mxu0 0.0
    %956 = vmatpush1.msra.mxu0 0.0
    %957 = vmatprep.subr.mxu0 0.0
    %958 = vmatpush1.msra.mxu0 0.0
    %959 = vmatprep.subr.mxu0 0.0
    %960 = vmatpush1.msra.mxu0 0.0
    %961 = vmatprep.subr.mxu0 0.0
    %962 = vmatpush1.msra.mxu0 0.0
    %963 = vmatprep.subr.mxu0 0.0
    %964 = vmatpush1.msra.mxu0 0.0
    %965 = vmatprep.subr.mxu0 0.0
    %966 = vmatpush1.msra.mxu0 0.0
    %967 = vmatprep.subr.mxu0 0.0
    %968 = vmatpush1.msra.mxu0 0.0
    %969 = vmatprep.subr.mxu0 0.0
    %970 = vmatpush1.msra.mxu0 0.0
    %971 = vmatprep.subr.mxu0 0.0
    %972 = vmatpush1.msra.mxu0 %v936
    %973 = vmatprep.subr.mxu0 0.0
    %974 = vmatpush1.msra.mxu0 %v935
    %975 = vmatprep.subr.mxu0 0.0
    %976 = vmatpush1.msra.mxu0 %v934
    %977 = vmatprep.subr.mxu0 0.0
    %978 = vmatpush1.msra.mxu0 %v933
    %979 = vmatprep.subr.mxu0 0.0
    %980 = vmatpush2.msra.mxu0 0.0
    %981 = vmatprep.subr.mxu0 0.0
    %982 = vmatpush2.msra.mxu0 0.0
    %983 = vmatprep.subr.mxu0 0.0
    %984 = vmatpush2.msra.mxu0 0.0
    %985 = vmatprep.subr.mxu0 0.0
    %986 = vmatpush2.msra.mxu0 0.0
    %987 = vmatprep.subr.mxu0 0.0
    %988 = vmatpush2.msra.mxu0 0.0
    %989 = vmatprep.subr.mxu0 0.0
    %990 = vmatpush2.msra.mxu0 0.0
    %991 = vmatprep.subr.mxu0 0.0
    %992 = vmatpush2.msra.mxu0 0.0
    %993 = vmatprep.subr.mxu0 0.0
    %994 = vmatpush2.msra.mxu0 0.0
    %995 = vmatprep.subr.mxu0 0.0
    %996 = vmatpush2.msra.mxu0 0.0
    %997 = vmatprep.subr.mxu0 0.0
    %998 = vmatpush2.msra.mxu0 0.0
    %999 = vmatprep.subr.mxu0 0.0
    %1000 = vmatpush2.msra.mxu0 0.0
    %1001 = vmatprep.subr.mxu0 0.0
    %1002 = vmatpush2.msra.mxu0 0.0
    %1003 = vmatprep.subr.mxu0 0.0
    %1004 = vmatpush2.msra.mxu0 0.0
    %1005 = vmatprep.subr.mxu0 0.0
    %1006 = vmatpush2.msra.mxu0 0.0
    %1007 = vmatprep.subr.mxu0 0.0
    %1008 = vmatpush2.msra.mxu0 0.0
    %1009 = vmatprep.subr.mxu0 0.0
    %1010 = vmatpush2.msra.mxu0 0.0
    %1011 = vmatprep.mubr.f32.mxu0 0.0
    %1012 = vmatmul.mubr.f32.gmra.mxu0 %v945
    %v1013 = vpop.f32.mrf.mxu0
    %v1014 = vadd.f32 %v942, %v1013
    %v1015 = vpop.f32.mrf.mxu0
    %1016 = vdwg.mxu0
    %v1017 = vld [vmem:[%s6] sm:$0x3f]
    %vm1018 = vcmask 48128
    %v1020 = vsel %vm1018, %v456, 0
    %vm1022 = vcmask 1045504
    %v1024 = vsel %vm1022, %v1017, 0
    %1026 = vmatprep.subr.mxu0 0.0
    %1027 = vmatpush1.msra.mxu0 0.0
    %1028 = vmatprep.subr.mxu0 0.0
    %1029 = vmatpush1.msra.mxu0 0.0
    %1030 = vmatprep.subr.mxu0 0.0
    %1031 = vmatpush1.msra.mxu0 0.0
    %1032 = vmatprep.subr.mxu0 0.0
    %1033 = vmatpush1.msra.mxu0 0.0
    %1034 = vmatprep.subr.mxu0 0.0
    %1035 = vmatpush1.msra.mxu0 0.0
    %1036 = vmatprep.subr.mxu0 0.0
    %1037 = vmatpush1.msra.mxu0 0.0
    %1038 = vmatprep.subr.mxu0 0.0
    %1039 = vmatpush1.msra.mxu0 0.0
    %1040 = vmatprep.subr.mxu0 0.0
    %1041 = vmatpush1.msra.mxu0 0.0
    %1042 = vmatprep.subr.mxu0 0.0
    %1043 = vmatpush1.msra.mxu0 0.0
    %1044 = vmatprep.subr.mxu0 0.0
    %1045 = vmatpush1.msra.mxu0 0.0
    %1046 = vmatprep.subr.mxu0 0.0
    %1047 = vmatpush1.msra.mxu0 0.0
    %1048 = vmatprep.subr.mxu0 0.0
    %1049 = vmatpush1.msra.mxu0 0.0
    %1050 = vmatprep.subr.mxu0 0.0
    %1051 = vmatpush1.msra.mxu0 0.0
    %1052 = vmatprep.subr.mxu0 0.0
    %1053 = vmatpush1.msra.mxu0 0.0
    %1054 = vmatprep.subr.mxu0 0.0
    %1055 = vmatpush1.msra.mxu0 0.0
    %1056 = vmatprep.subr.mxu0 0.0
    %1057 = vmatpush1.msra.mxu0 %v1024
    %1058 = vmatprep.subr.mxu0 0.0
    %1059 = vmatpush2.msra.mxu0 0.0
    %1060 = vmatprep.subr.mxu0 0.0
    %1061 = vmatpush2.msra.mxu0 0.0
    %1062 = vmatprep.subr.mxu0 0.0
    %1063 = vmatpush2.msra.mxu0 0.0
    %1064 = vmatprep.subr.mxu0 0.0
    %1065 = vmatpush2.msra.mxu0 0.0
    %1066 = vmatprep.subr.mxu0 0.0
    %1067 = vmatpush2.msra.mxu0 0.0
    %1068 = vmatprep.subr.mxu0 0.0
    %1069 = vmatpush2.msra.mxu0 0.0
    %1070 = vmatprep.subr.mxu0 0.0
    %1071 = vmatpush2.msra.mxu0 0.0
    %1072 = vmatprep.subr.mxu0 0.0
    %1073 = vmatpush2.msra.mxu0 0.0
    %1074 = vmatprep.subr.mxu0 0.0
    %1075 = vmatpush2.msra.mxu0 0.0
    %1076 = vmatprep.subr.mxu0 0.0
    %1077 = vmatpush2.msra.mxu0 0.0
    %1078 = vmatprep.subr.mxu0 0.0
    %1079 = vmatpush2.msra.mxu0 0.0
    %1080 = vmatprep.subr.mxu0 0.0
    %1081 = vmatpush2.msra.mxu0 0.0
    %1082 = vmatprep.subr.mxu0 0.0
    %1083 = vmatpush2.msra.mxu0 0.0
    %1084 = vmatprep.subr.mxu0 0.0
    %1085 = vmatpush2.msra.mxu0 0.0
    %1086 = vmatprep.subr.mxu0 0.0
    %1087 = vmatpush2.msra.mxu0 0.0
    %1088 = vmatprep.subr.mxu0 0.0
    %1089 = vmatpush2.msra.mxu0 0.0
    %1090 = vmatprep.mubr.f32.mxu0 0.0
    %1091 = vmatmul.mubr.f32.gmra.mxu0 %v1020
    %v1092 = vpop.f32.mrf.mxu0
    %v1093 = vadd.f32 0.0, %v1092
    %v1094 = vpop.f32.mrf.mxu0
    %1095 = vdwg.mxu0
    %v1096 = vmul.f32 %v1093, %v1014
    %v1097 = vld [vmem:[%s7] sm:$0xff]
    %v1098 = vld [vmem:[%s7 + $0x8] sm:$0xff]
    %v1099 = vld [vmem:[%s7 + $0x10] sm:$0xff]
    %v1100 = vld [vmem:[%s7 + $0x18] sm:$0xff]
    %v1101 = vld [vmem:[%s7 + $0x20] sm:$0xf]
    %1103 = vrot.lane.b32.xlu0 %v1014, 92
    %v1104 = vpop.permute.xlu0 %1103
    %vm1106 = vcmask 293888
    %v1108 = vsel %vm1106, %v1096, 0
    %vm1110 = vcmask 1043456
    %v1112 = vsel %vm1110, %v1101, 0
    %1114 = vmatprep.subr.mxu0 0.0
    %1115 = vmatpush1.msra.mxu0 0.0
    %1116 = vmatprep.subr.mxu0 0.0
    %1117 = vmatpush1.msra.mxu0 0.0
    %1118 = vmatprep.subr.mxu0 0.0
    %1119 = vmatpush1.msra.mxu0 0.0
    %1120 = vmatprep.subr.mxu0 0.0
    %1121 = vmatpush1.msra.mxu0 0.0
    %1122 = vmatprep.subr.mxu0 0.0
    %1123 = vmatpush1.msra.mxu0 0.0
    %1124 = vmatprep.subr.mxu0 0.0
    %1125 = vmatpush1.msra.mxu0 0.0
    %1126 = vmatprep.subr.mxu0 0.0
    %1127 = vmatpush1.msra.mxu0 0.0
    %1128 = vmatprep.subr.mxu0 0.0
    %1129 = vmatpush1.msra.mxu0 0.0
    %1130 = vmatprep.subr.mxu0 0.0
    %1131 = vmatpush1.msra.mxu0 0.0
    %1132 = vmatprep.subr.mxu0 0.0
    %1133 = vmatpush1.msra.mxu0 0.0
    %1134 = vmatprep.subr.mxu0 0.0
    %1135 = vmatpush1.msra.mxu0 0.0
    %1136 = vmatprep.subr.mxu0 0.0
    %1137 = vmatpush1.msra.mxu0 %v1112
    %1138 = vmatprep.subr.mxu0 0.0
    %1139 = vmatpush1.msra.mxu0 %v1100
    %1140 = vmatprep.subr.mxu0 0.0
    %1141 = vmatpush1.msra.mxu0 %v1099
    %1142 = vmatprep.subr.mxu0 0.0
    %1143 = vmatpush1.msra.mxu0 %v1098
    %1144 = vmatprep.subr.mxu0 0.0
    %1145 = vmatpush1.msra.mxu0 %v1097
    %1146 = vmatprep.subr.mxu0 0.0
    %1147 = vmatpush2.msra.mxu0 0.0
    %1148 = vmatprep.subr.mxu0 0.0
    %1149 = vmatpush2.msra.mxu0 0.0
    %1150 = vmatprep.subr.mxu0 0.0
    %1151 = vmatpush2.msra.mxu0 0.0
    %1152 = vmatprep.subr.mxu0 0.0
    %1153 = vmatpush2.msra.mxu0 0.0
    %1154 = vmatprep.subr.mxu0 0.0
    %1155 = vmatpush2.msra.mxu0 0.0
    %1156 = vmatprep.subr.mxu0 0.0
    %1157 = vmatpush2.msra.mxu0 0.0
    %1158 = vmatprep.subr.mxu0 0.0
    %1159 = vmatpush2.msra.mxu0 0.0
    %1160 = vmatprep.subr.mxu0 0.0
    %1161 = vmatpush2.msra.mxu0 0.0
    %1162 = vmatprep.subr.mxu0 0.0
    %1163 = vmatpush2.msra.mxu0 0.0
    %1164 = vmatprep.subr.mxu0 0.0
    %1165 = vmatpush2.msra.mxu0 0.0
    %1166 = vmatprep.subr.mxu0 0.0
    %1167 = vmatpush2.msra.mxu0 0.0
    %1168 = vmatprep.subr.mxu0 0.0
    %1169 = vmatpush2.msra.mxu0 0.0
    %1170 = vmatprep.subr.mxu0 0.0
    %1171 = vmatpush2.msra.mxu0 0.0
    %1172 = vmatprep.subr.mxu0 0.0
    %1173 = vmatpush2.msra.mxu0 0.0
    %1174 = vmatprep.subr.mxu0 0.0
    %1175 = vmatpush2.msra.mxu0 0.0
    %1176 = vmatprep.subr.mxu0 0.0
    %1177 = vmatpush2.msra.mxu0 0.0
    %1178 = vmatprep.mubr.f32.mxu0 0.0
    %1179 = vmatmul.mubr.f32.gmra.mxu0 %v1108
    %v1180 = vpop.f32.mrf.mxu0
    %v1181 = vadd.f32 %v1104, %v1180
    %v1182 = vpop.f32.mrf.mxu0
    %1183 = vdwg.mxu0
    %v1184 = vld [vmem:[#allocation5 + $0x40] sm:$0xff]
    %v1185 = vld [vmem:[#allocation5 + $0x90] sm:$0xff]
    %v1186 = vld [vmem:[#allocation5 + $0xe0] sm:$0xff]
    %v1187 = vld [vmem:[#allocation5 + $0x130] sm:$0xff]
    %v1188 = vld [vmem:[%s4 + $0x8] sm:$0x1]
    %v1190 = vlaneseq
    %v1191 = vshrl.u32 %v1190, 7
    %v1192 = vsub.s32 0, %v1191
    %v1193 = vrot.slane %v1188, %v1192
    %1195 = vmatprep.subr.mxu0 0.0
    %1196 = vmatpush1.msra.mxu0 0.0
    %1197 = vmatprep.subr.mxu0 0.0
    %1198 = vmatpush1.msra.mxu0 0.0
    %1199 = vmatprep.subr.mxu0 0.0
    %1200 = vmatpush1.msra.mxu0 0.0
    %1201 = vmatprep.subr.mxu0 0.0
    %1202 = vmatpush1.msra.mxu0 0.0
    %1203 = vmatprep.subr.mxu0 0.0
    %1204 = vmatpush1.msra.mxu0 0.0
    %1205 = vmatprep.subr.mxu0 0.0
    %1206 = vmatpush1.msra.mxu0 0.0
    %1207 = vmatprep.subr.mxu0 0.0
    %1208 = vmatpush1.msra.mxu0 0.0
    %1209 = vmatprep.subr.mxu0 0.0
    %1210 = vmatpush1.msra.mxu0 0.0
    %1211 = vmatprep.subr.mxu0 0.0
    %1212 = vmatpush1.msra.mxu0 0.0
    %1213 = vmatprep.subr.mxu0 0.0
    %1214 = vmatpush1.msra.mxu0 0.0
    %1215 = vmatprep.subr.mxu0 0.0
    %1216 = vmatpush1.msra.mxu0 0.0
    %1217 = vmatprep.subr.mxu0 0.0
    %1218 = vmatpush1.msra.mxu0 0.0
    %1219 = vmatprep.subr.mxu0 0.0
    %1220 = vmatpush1.msra.mxu0 %v1187
    %1221 = vmatprep.subr.mxu0 0.0
    %1222 = vmatpush1.msra.mxu0 %v1186
    %1223 = vmatprep.subr.mxu0 0.0
    %1224 = vmatpush1.msra.mxu0 %v1185
    %1225 = vmatprep.subr.mxu0 0.0
    %1226 = vmatpush1.msra.mxu0 %v1184
    %1227 = vmatprep.subr.mxu0 0.0
    %1228 = vmatpush2.msra.mxu0 0.0
    %1229 = vmatprep.subr.mxu0 0.0
    %1230 = vmatpush2.msra.mxu0 0.0
    %1231 = vmatprep.subr.mxu0 0.0
    %1232 = vmatpush2.msra.mxu0 0.0
    %1233 = vmatprep.subr.mxu0 0.0
    %1234 = vmatpush2.msra.mxu0 0.0
    %1235 = vmatprep.subr.mxu0 0.0
    %1236 = vmatpush2.msra.mxu0 0.0
    %1237 = vmatprep.subr.mxu0 0.0
    %1238 = vmatpush2.msra.mxu0 0.0
    %1239 = vmatprep.subr.mxu0 0.0
    %1240 = vmatpush2.msra.mxu0 0.0
    %1241 = vmatprep.subr.mxu0 0.0
    %1242 = vmatpush2.msra.mxu0 0.0
    %1243 = vmatprep.subr.mxu0 0.0
    %1244 = vmatpush2.msra.mxu0 0.0
    %1245 = vmatprep.subr.mxu0 0.0
    %1246 = vmatpush2.msra.mxu0 0.0
    %1247 = vmatprep.subr.mxu0 0.0
    %1248 = vmatpush2.msra.mxu0 0.0
    %1249 = vmatprep.subr.mxu0 0.0
    %1250 = vmatpush2.msra.mxu0 0.0
    %1251 = vmatprep.subr.mxu0 0.0
    %1252 = vmatpush2.msra.mxu0 0.0
    %1253 = vmatprep.subr.mxu0 0.0
    %1254 = vmatpush2.msra.mxu0 0.0
    %1255 = vmatprep.subr.mxu0 0.0
    %1256 = vmatpush2.msra.mxu0 0.0
    %1257 = vmatprep.subr.mxu0 0.0
    %1258 = vmatpush2.msra.mxu0 0.0
    %1259 = vmatprep.mubr.f32.mxu0 0.0
    %1260 = vmatmul.mubr.f32.gmra.mxu0 %v771
    %v1261 = vpop.f32.mrf.mxu0
    %v1262 = vadd.f32 %v1193, %v1261
    %v1263 = vpop.f32.mrf.mxu0
    %1264 = vdwg.mxu0
    %v1265 = vadd.f32 %v1262, 1.0
    %1267 = vrot.lane.b32.xlu0 %v1181, 12
    %v1268 = vpop.permute.xlu0 %1267
    %v1270 = vmul.f32 %v1265, %v1268
    %1272 = vrot.lane.b32.xlu0 %v1262, 6
    %v1273 = vpop.permute.xlu0 %1272
    %v1275 = vadd.f32 %v1270, %v1273
    %1277 = vrot.lane.b32.xlu0 %v1275, 116
    %v1278 = vpop.permute.xlu0 %1277
    %v1280 = vmul.f32 %v1262, %v1278
    %v1281 = vadd.f32 %v456, %v1280
    %v1282 = vld [vmem:[#allocation8] sm:$0x3f]
    %v1283 = vld [vmem:[#allocation5 + $0x48] sm:$0xff]
    %v1284 = vld [vmem:[#allocation5 + $0x98] sm:$0xff]
    %v1285 = vld [vmem:[#allocation5 + $0xe8] sm:$0xff]
    %v1286 = vld [vmem:[#allocation5 + $0x138] sm:$0xff]
    %1287 = vmatprep.subr.mxu0 0.0
    %1288 = vmatpush1.msra.mxu0 0.0
    %1289 = vmatprep.subr.mxu0 0.0
    %1290 = vmatpush1.msra.mxu0 0.0
    %1291 = vmatprep.subr.mxu0 0.0
    %1292 = vmatpush1.msra.mxu0 0.0
    %1293 = vmatprep.subr.mxu0 0.0
    %1294 = vmatpush1.msra.mxu0 0.0
    %1295 = vmatprep.subr.mxu0 0.0
    %1296 = vmatpush1.msra.mxu0 0.0
    %1297 = vmatprep.subr.mxu0 0.0
    %1298 = vmatpush1.msra.mxu0 0.0
    %1299 = vmatprep.subr.mxu0 0.0
    %1300 = vmatpush1.msra.mxu0 0.0
    %1301 = vmatprep.subr.mxu0 0.0
    %1302 = vmatpush1.msra.mxu0 0.0
    %1303 = vmatprep.subr.mxu0 0.0
    %1304 = vmatpush1.msra.mxu0 0.0
    %1305 = vmatprep.subr.mxu0 0.0
    %1306 = vmatpush1.msra.mxu0 0.0
    %1307 = vmatprep.subr.mxu0 0.0
    %1308 = vmatpush1.msra.mxu0 0.0
    %1309 = vmatprep.subr.mxu0 0.0
    %1310 = vmatpush1.msra.mxu0 0.0
    %1311 = vmatprep.subr.mxu0 0.0
    %1312 = vmatpush1.msra.mxu0 %v1286
    %1313 = vmatprep.subr.mxu0 0.0
    %1314 = vmatpush1.msra.mxu0 %v1285
    %1315 = vmatprep.subr.mxu0 0.0
    %1316 = vmatpush1.msra.mxu0 %v1284
    %1317 = vmatprep.subr.mxu0 0.0
    %1318 = vmatpush1.msra.mxu0 %v1283
    %1319 = vmatprep.subr.mxu0 0.0
    %1320 = vmatpush2.msra.mxu0 0.0
    %1321 = vmatprep.subr.mxu0 0.0
    %1322 = vmatpush2.msra.mxu0 0.0
    %1323 = vmatprep.subr.mxu0 0.0
    %1324 = vmatpush2.msra.mxu0 0.0
    %1325 = vmatprep.subr.mxu0 0.0
    %1326 = vmatpush2.msra.mxu0 0.0
    %1327 = vmatprep.subr.mxu0 0.0
    %1328 = vmatpush2.msra.mxu0 0.0
    %1329 = vmatprep.subr.mxu0 0.0
    %1330 = vmatpush2.msra.mxu0 0.0
    %1331 = vmatprep.subr.mxu0 0.0
    %1332 = vmatpush2.msra.mxu0 0.0
    %1333 = vmatprep.subr.mxu0 0.0
    %1334 = vmatpush2.msra.mxu0 0.0
    %1335 = vmatprep.subr.mxu0 0.0
    %1336 = vmatpush2.msra.mxu0 0.0
    %1337 = vmatprep.subr.mxu0 0.0
    %1338 = vmatpush2.msra.mxu0 0.0
    %1339 = vmatprep.subr.mxu0 0.0
    %1340 = vmatpush2.msra.mxu0 0.0
    %1341 = vmatprep.subr.mxu0 0.0
    %1342 = vmatpush2.msra.mxu0 0.0
    %1343 = vmatprep.subr.mxu0 0.0
    %1344 = vmatpush2.msra.mxu0 0.0
    %1345 = vmatprep.subr.mxu0 0.0
    %1346 = vmatpush2.msra.mxu0 0.0
    %1347 = vmatprep.subr.mxu0 0.0
    %1348 = vmatpush2.msra.mxu0 0.0
    %1349 = vmatprep.subr.mxu0 0.0
    %1350 = vmatpush2.msra.mxu0 0.0
    %1351 = vmatprep.mubr.f32.mxu0 0.0
    %1352 = vmatmul.mubr.f32.gmra.mxu0 %v387
    %v1353 = vpop.f32.mrf.mxu0
    %v1354 = vadd.f32 0.0, %v1353
    %v1355 = vpop.f32.mrf.mxu0
    %1356 = vdwg.mxu0
    %v1358 = vsel %vm1018, %v1281, 0
    %v1361 = vsel %vm1022, %v1282, 0
    %1363 = vmatprep.subr.mxu0 0.0
    %1364 = vmatpush1.msra.mxu0 0.0
    %1365 = vmatprep.subr.mxu0 0.0
    %1366 = vmatpush1.msra.mxu0 0.0
    %1367 = vmatprep.subr.mxu0 0.0
    %1368 = vmatpush1.msra.mxu0 0.0
    %1369 = vmatprep.subr.mxu0 0.0
    %1370 = vmatpush1.msra.mxu0 0.0
    %1371 = vmatprep.subr.mxu0 0.0
    %1372 = vmatpush1.msra.mxu0 0.0
    %1373 = vmatprep.subr.mxu0 0.0
    %1374 = vmatpush1.msra.mxu0 0.0
    %1375 = vmatprep.subr.mxu0 0.0
    %1376 = vmatpush1.msra.mxu0 0.0
    %1377 = vmatprep.subr.mxu0 0.0
    %1378 = vmatpush1.msra.mxu0 0.0
    %1379 = vmatprep.subr.mxu0 0.0
    %1380 = vmatpush1.msra.mxu0 0.0
    %1381 = vmatprep.subr.mxu0 0.0
    %1382 = vmatpush1.msra.mxu0 0.0
    %1383 = vmatprep.subr.mxu0 0.0
    %1384 = vmatpush1.msra.mxu0 0.0
    %1385 = vmatprep.subr.mxu0 0.0
    %1386 = vmatpush1.msra.mxu0 0.0
    %1387 = vmatprep.subr.mxu0 0.0
    %1388 = vmatpush1.msra.mxu0 0.0
    %1389 = vmatprep.subr.mxu0 0.0
    %1390 = vmatpush1.msra.mxu0 0.0
    %1391 = vmatprep.subr.mxu0 0.0
    %1392 = vmatpush1.msra.mxu0 0.0
    %1393 = vmatprep.subr.mxu0 0.0
    %1394 = vmatpush1.msra.mxu0 %v1361
    %1395 = vmatprep.subr.mxu0 0.0
    %1396 = vmatpush2.msra.mxu0 0.0
    %1397 = vmatprep.subr.mxu0 0.0
    %1398 = vmatpush2.msra.mxu0 0.0
    %1399 = vmatprep.subr.mxu0 0.0
    %1400 = vmatpush2.msra.mxu0 0.0
    %1401 = vmatprep.subr.mxu0 0.0
    %1402 = vmatpush2.msra.mxu0 0.0
    %1403 = vmatprep.subr.mxu0 0.0
    %1404 = vmatpush2.msra.mxu0 0.0
    %1405 = vmatprep.subr.mxu0 0.0
    %1406 = vmatpush2.msra.mxu0 0.0
    %1407 = vmatprep.subr.mxu0 0.0
    %1408 = vmatpush2.msra.mxu0 0.0
    %1409 = vmatprep.subr.mxu0 0.0
    %1410 = vmatpush2.msra.mxu0 0.0
    %1411 = vmatprep.subr.mxu0 0.0
    %1412 = vmatpush2.msra.mxu0 0.0
    %1413 = vmatprep.subr.mxu0 0.0
    %1414 = vmatpush2.msra.mxu0 0.0
    %1415 = vmatprep.subr.mxu0 0.0
    %1416 = vmatpush2.msra.mxu0 0.0
    %1417 = vmatprep.subr.mxu0 0.0
    %1418 = vmatpush2.msra.mxu0 0.0
    %1419 = vmatprep.subr.mxu0 0.0
    %1420 = vmatpush2.msra.mxu0 0.0
    %1421 = vmatprep.subr.mxu0 0.0
    %1422 = vmatpush2.msra.mxu0 0.0
    %1423 = vmatprep.subr.mxu0 0.0
    %1424 = vmatpush2.msra.mxu0 0.0
    %1425 = vmatprep.subr.mxu0 0.0
    %1426 = vmatpush2.msra.mxu0 0.0
    %1427 = vmatprep.mubr.f32.mxu0 0.0
    %1428 = vmatmul.mubr.f32.gmra.mxu0 %v1358
    %v1429 = vpop.f32.mrf.mxu0
    %v1430 = vadd.f32 %v1354, %v1429
    %v1431 = vpop.f32.mrf.mxu0
    %1432 = vdwg.mxu0
    %1433 = vst [vmem:[#allocation10] sm:$0xff] %v1430
    // Predicated region
    $region54: #{tpu_custom_call.1} parent=1 // pred_check
      _
    $region55: #{tpu_custom_call.1} parent=1 // pred_check_branch
      %1435 = sbr.rel (0) target = $region57
    $region56: #{tpu_custom_call.1} parent=1 // pred_region
      %s1437 = ssub.s32 128, 128
      %1438 = vsyncadd [#allocation4], %s1437
      %s1440 = sshll.u32 [#allocation10], 4
      %s1441 = int_to_ptr.vmem [resolvable:$true] %s1440
      %1443 = dma.vmem_to_hbm [thread:$0]  %s1441, 128, %s9, [#allocation4]
    $region57: #{tpu_custom_call.1} parent=1 // pred_fallthru
      _
    // Predicated region
    $region58: #{tpu_custom_call.1} parent=1 // pred_check
      _
    $region59: #{tpu_custom_call.1} parent=1 // pred_check_branch
      %1445 = sbr.rel (0) target = $region61
    $region60: #{tpu_custom_call.1} parent=1 // pred_region
      %1446 = dma.done [#allocation4], 128
    $region61: #{tpu_custom_call.1} parent=1 // pred_fallthru
      _
    %1447 = vsyncpa [#allocation3], 1
    %1448 = vsyncpa [#allocation6], 1
    %1449 = vsyncpa [#allocation9], 1
    %1450 = vsyncpa [#allocation4], 1

</llo_original>
